<compile_context>
chip_gen: v5e
topology: v5e:2x2
jax: 0.10.0
libtpu: 0.0.40
codegen_flags: <defaults>
</compile_context>

<pallas_src>
import functools

import jax
import jax.numpy as jnp
from jax import lax
from jax.experimental import pallas as pl
from jax.experimental.pallas import tpu as pltpu

LANE = 128
SUBLANE = 8


def _round_up(v, m):
    return (v + m - 1) // m * m


# ----------------------------------------------------------------------------
# Fused Pallas kernel:
#   node_embed -> L x (dense1+GELU -> mean-aggr -> dense2+GELU)
#              -> global_mean_pool -> head
# ----------------------------------------------------------------------------
def _fused_forward_kernel(x_ref, aggr_ref, pool_ref,
                          we_ref, be_ref,
                          w1_ref, b1_ref, w2_ref, b2_ref,
                          wh_ref, bh_ref,
                          o_ref):
    f32 = jnp.float32
    inv_sqrt2 = jnp.float32(0.7071067811865476)

    def gelu(y):  # exact erf-based GELU == nn.GELU() default
        return 0.5 * y * (1.0 + lax.erf(y * inv_sqrt2))

    aggr = aggr_ref[...]  # (N_pad, N_pad) row-normalized mean aggregation

    # node_embed (no activation)
    h = jnp.dot(x_ref[...], we_ref[...], preferred_element_type=f32) + be_ref[...]

    num_layers = w1_ref.shape[0]          # static
    for l in range(num_layers):           # static unroll, static weight indices
        # message: dense1 + GELU      (dropout1 = identity in eval mode)
        msg = gelu(jnp.dot(h, w1_ref[l], preferred_element_type=f32) + b1_ref[l])
        # gather by source + mean scatter by dest == aggr_matrix @ msg
        agg = jnp.dot(aggr, msg, preferred_element_type=f32)
        # update: dense2 + GELU       (dropout2 = identity in eval mode)
        h = gelu(jnp.dot(agg, w2_ref[l], preferred_element_type=f32) + b2_ref[l])

    # global_mean_pool, then head (folded into the same kernel)
    pooled = jnp.dot(pool_ref[...], h, preferred_element_type=f32)
    o_ref[...] = (jnp.dot(pooled, wh_ref[...], preferred_element_type=f32)
                  + bh_ref[...]).astype(o_ref.dtype)


def _fused_forward(x_pad, aggr_m, pool_m, p):
    g_pad = pool_m.shape[0]
    out_lanes = p["wh"].shape[1]

    def full(shape):
        return pl.BlockSpec(shape, lambda: (0,) * len(shape))

    operands = (x_pad, aggr_m, pool_m,
                p["we"], p["be"], p["w1"], p["b1"], p["w2"], p["b2"],
                p["wh"], p["bh"])
    return pl.pallas_call(
        _fused_forward_kernel,
        out_shape=jax.ShapeDtypeStruct((g_pad, out_lanes), jnp.float32),
        in_specs=[full(op.shape) for op in operands],
        out_specs=full((g_pad, out_lanes)),
        compiler_params=pltpu.CompilerParams(vmem_limit_bytes=64 * 1024 * 1024),
    )(*operands)


# ----------------------------------------------------------------------------
# Parameter init (PyTorch-style uniform init at the REAL shapes), then zero-pad
# once to lane-dense shapes and stack the conv layers.
# ----------------------------------------------------------------------------
def init_params(key, channels, layer_num, in_feats=118):
    def linear_init(k, fan_in, fan_out):
        kw, kb = jax.random.split(k)
        bound = 1.0 / jnp.sqrt(fan_in)
        w = jax.random.uniform(kw, (fan_in, fan_out), jnp.float32, -bound, bound)
        b = jax.random.uniform(kb, (fan_out,), jnp.float32, -bound, bound)
        return w, b

    keys = jax.random.split(key, 2 + 2 * layer_num)
    params = {
        "node_embed": linear_init(keys[0], in_feats, channels),
        "head": linear_init(keys[1], channels, 1),
        "convs": [],
    }
    for i in range(layer_num):
        d1 = linear_init(keys[2 + 2 * i], channels, channels)
        d2 = linear_init(keys[3 + 2 * i], channels, channels)
        params["convs"].append({"dense1": d1, "dense2": d2})
    return params


def pad_params(params, channels, in_feats=118):
    c_pad = _round_up(channels, LANE)
    f_pad = _round_up(in_feats, LANE)

    def pad_w(w, rows, cols):
        return jnp.zeros((rows, cols), jnp.float32).at[: w.shape[0], : w.shape[1]].set(w)

    def pad_b(b, cols):
        return jnp.zeros((1, cols), jnp.float32).at[0, : b.shape[0]].set(b)

    we, be = params["node_embed"]
    wh, bh = params["head"]
    w1 = jnp.stack([pad_w(cv["dense1"][0], c_pad, c_pad) for cv in params["convs"]])
    b1 = jnp.stack([pad_b(cv["dense1"][1], c_pad) for cv in params["convs"]])
    w2 = jnp.stack([pad_w(cv["dense2"][0], c_pad, c_pad) for cv in params["convs"]])
    b2 = jnp.stack([pad_b(cv["dense2"][1], c_pad) for cv in params["convs"]])
    return {
        "we": pad_w(we, f_pad, c_pad),
        "be": pad_b(be, c_pad),
        "w1": w1, "b1": b1, "w2": w2, "b2": b2,
        "wh": pad_w(wh, c_pad, LANE),   # head output padded to a full 128-lane slab
        "bh": pad_b(bh, LANE),
    }


# ----------------------------------------------------------------------------
# Jitted forward pass (matrix construction + one fused Pallas kernel).
# ----------------------------------------------------------------------------
@functools.partial(jax.jit, static_argnames=("num_graphs",))
def conductivity_predictor_forward(padded_params, x, edge_index, batch, num_graphs):
    n = x.shape[0]
    n_pad = _round_up(max(n, SUBLANE), SUBLANE)
    g_pad = _round_up(max(num_graphs, SUBLANE), SUBLANE)
    f_pad = padded_params["we"].shape[0]

    # Zero-pad node features to (n_pad, f_pad); padded nodes never reach outputs.
    x_pad = jnp.zeros((n_pad, f_pad), jnp.float32).at[:n, : x.shape[1]].set(x)

    # Dense mean-aggregation matrix (dest x source), row-normalized; nodes with
    # no incoming edges (and padded nodes) get all-zero rows -> 0 (PyG mean semantics).
    src, dst = edge_index[0], edge_index[1]
    aggr = jnp.zeros((n_pad, n_pad), jnp.float32).at[dst, src].add(1.0)
    aggr = aggr / jnp.maximum(aggr.sum(axis=1, keepdims=True), 1.0)

    # global_mean_pool matrix (graph x node), row-normalized; empty graphs -> 0.
    pool = jnp.zeros((g_pad, n_pad), jnp.float32).at[batch, jnp.arange(n)].add(1.0)
    pool = pool / jnp.maximum(pool.sum(axis=1, keepdims=True), 1.0)

    out_pad = _fused_forward(x_pad, aggr, pool, padded_params)   # (g_pad, 128)
    return out_pad[:num_graphs, :1]                              # (G, 1)


# ----------------------------------------------------------------------------
# Pure-JAX reference (unpadded) for a correctness sanity check.
# ----------------------------------------------------------------------------
def reference_forward(params, x, edge_index, batch, num_graphs):
    def gelu(y):
        return 0.5 * y * (1.0 + lax.erf(y * 0.7071067811865476))

    n = x.shape[0]
    src, dst = edge_index[0], edge_index[1]
    aggr = jnp.zeros((n, n), jnp.float32).at[dst, src].add(1.0)
    aggr = aggr / jnp.maximum(aggr.sum(axis=1, keepdims=True), 1.0)
    pool = jnp.zeros((num_graphs, n), jnp.float32).at[batch, jnp.arange(n)].add(1.0)
    pool = pool / jnp.maximum(pool.sum(axis=1, keepdims=True), 1.0)

    we, be = params["node_embed"]
    h = x @ we + be
    for cv in params["convs"]:
        w1, b1 = cv["dense1"]
        w2, b2 = cv["dense2"]
        msg = gelu(h @ w1 + b1)
        agg = aggr @ msg
        h = gelu(agg @ w2 + b2)
    pooled = pool @ h
    wh, bh = params["head"]
    return pooled @ wh + bh


# ----------------------------------------------------------------------------
# Demo
# ----------------------------------------------------------------------------
if __name__ == "__main__":
    CHANNELS = 32
    LAYER_NUM = 4
    N_NODES = 16        # 2 graphs x 8 nodes
    NUM_GRAPHS = 2
    IN_FEATS = 118

    key = jax.random.PRNGKey(0)
    k_params, k_x = jax.random.split(key)

    params = init_params(k_params, CHANNELS, LAYER_NUM, IN_FEATS)
    padded_params = pad_params(params, CHANNELS, IN_FEATS)

    # Node features: (N, 118)
    x = jax.random.normal(k_x, (N_NODES, IN_FEATS), jnp.float32)

    # Two ring graphs of 8 nodes each, edges in both directions.
    src_list, dst_list = [], []
    for g in range(NUM_GRAPHS):
        base = g * 8
        for i in range(8):
            a, b = base + i, base + (i + 1) % 8
            src_list += [a, b]
            dst_list += [b, a]
    edge_index = jnp.array([src_list, dst_list], dtype=jnp.int32)   # (2, E)
    batch = jnp.array([0] * 8 + [1] * 8, dtype=jnp.int32)           # (N,)

    out = conductivity_predictor_forward(padded_params, x, edge_index, batch, NUM_GRAPHS)
    out = jax.block_until_ready(out)
    assert out.shape == (NUM_GRAPHS, 1)
    assert bool(jnp.all(jnp.isfinite(out)))

    ref = reference_forward(params, x, edge_index, batch, NUM_GRAPHS)
    assert bool(jnp.all(jnp.abs(out - ref) < 1e-3)), (out, ref)

    print("KERNEL_OK")
</pallas_src>

<mosaic_0001>
module attributes {stable_mosaic.version = 11 : i64} {
  func.func @_fused_forward_kernel(%arg0: memref<16x128xf32, #tpu.memory_space<vmem>>, %arg1: memref<16x16xf32, #tpu.memory_space<vmem>>, %arg2: memref<8x16xf32, #tpu.memory_space<vmem>>, %arg3: memref<128x128xf32, #tpu.memory_space<vmem>>, %arg4: memref<1x128xf32, #tpu.memory_space<vmem>>, %arg5: memref<4x128x128xf32, #tpu.memory_space<vmem>>, %arg6: memref<4x1x128xf32, #tpu.memory_space<vmem>>, %arg7: memref<4x128x128xf32, #tpu.memory_space<vmem>>, %arg8: memref<4x1x128xf32, #tpu.memory_space<vmem>>, %arg9: memref<128x128xf32, #tpu.memory_space<vmem>>, %arg10: memref<1x128xf32, #tpu.memory_space<vmem>>, %arg11: memref<8x128xf32, #tpu.memory_space<vmem>>) attributes {dimension_semantics = [], scalar_prefetch = 0 : i64, scratch_operands = 0 : i64, tpu.core_type = #tpu.core_type<tc>} {
    %c0 = arith.constant 0 : index
    %c0_0 = arith.constant 0 : index
    %0 = vector.load %arg1[%c0, %c0_0] : memref<16x16xf32, #tpu.memory_space<vmem>>, vector<16x16xf32>
    %c0_1 = arith.constant 0 : index
    %c0_2 = arith.constant 0 : index
    %1 = vector.load %arg0[%c0_1, %c0_2] : memref<16x128xf32, #tpu.memory_space<vmem>>, vector<16x128xf32>
    %c0_3 = arith.constant 0 : index
    %c0_4 = arith.constant 0 : index
    %2 = vector.load %arg3[%c0_3, %c0_4] : memref<128x128xf32, #tpu.memory_space<vmem>>, vector<128x128xf32>
    %cst = arith.constant dense<0.000000e+00> : vector<16x128xf32>
    %3 = tpu.matmul %1, %2, %cst {dimension_numbers = #tpu.dot_dimension_numbers<[1], [0], [0], [1], [0, 0, 1, 1], [], []>} : vector<16x128xf32>, vector<128x128xf32>, vector<16x128xf32> -> vector<16x128xf32>
    %c0_5 = arith.constant 0 : index
    %c0_6 = arith.constant 0 : index
    %4 = vector.load %arg4[%c0_5, %c0_6] : memref<1x128xf32, #tpu.memory_space<vmem>>, vector<1x128xf32>
    %5 = vector.broadcast %4 : vector<1x128xf32> to vector<16x128xf32>
    %6 = arith.addf %3, %5 : vector<16x128xf32>
    %c0_7 = arith.constant 0 : index
    %c0_8 = arith.constant 0 : index
    %c0_9 = arith.constant 0 : index
    %7 = vector.load %arg5[%c0_7, %c0_8, %c0_9] : memref<4x128x128xf32, #tpu.memory_space<vmem>>, vector<1x128x128xf32>
    %8 = vector.shape_cast %7 : vector<1x128x128xf32> to vector<128x128xf32>
    %cst_10 = arith.constant dense<0.000000e+00> : vector<16x128xf32>
    %9 = tpu.matmul %6, %8, %cst_10 {dimension_numbers = #tpu.dot_dimension_numbers<[1], [0], [0], [1], [0, 0, 1, 1], [], []>} : vector<16x128xf32>, vector<128x128xf32>, vector<16x128xf32> -> vector<16x128xf32>
    %c0_11 = arith.constant 0 : index
    %c0_12 = arith.constant 0 : index
    %c0_13 = arith.constant 0 : index
    %10 = vector.load %arg6[%c0_11, %c0_12, %c0_13] : memref<4x1x128xf32, #tpu.memory_space<vmem>>, vector<1x1x128xf32>
    %11 = vector.shape_cast %10 : vector<1x1x128xf32> to vector<1x128xf32>
    %12 = vector.broadcast %11 : vector<1x128xf32> to vector<16x128xf32>
    %13 = arith.addf %9, %12 : vector<16x128xf32>
    %cst_14 = arith.constant 5.000000e-01 : f32
    %14 = vector.broadcast %cst_14 : f32 to vector<16x128xf32>
    %15 = arith.mulf %14, %13 : vector<16x128xf32>
    %cst_15 = arith.constant 0.707106769 : f32
    %16 = vector.broadcast %cst_15 : f32 to vector<16x128xf32>
    %17 = arith.mulf %13, %16 : vector<16x128xf32>
    %18 = math.erf %17 : vector<16x128xf32>
    %cst_16 = arith.constant 1.000000e+00 : f32
    %19 = vector.broadcast %cst_16 : f32 to vector<16x128xf32>
    %20 = arith.addf %19, %18 : vector<16x128xf32>
    %21 = arith.mulf %15, %20 : vector<16x128xf32>
    %cst_17 = arith.constant dense<0.000000e+00> : vector<16x128xf32>
    %22 = tpu.matmul %0, %21, %cst_17 {dimension_numbers = #tpu.dot_dimension_numbers<[1], [0], [0], [1], [0, 0, 1, 1], [], []>} : vector<16x16xf32>, vector<16x128xf32>, vector<16x128xf32> -> vector<16x128xf32>
    %c0_18 = arith.constant 0 : index
    %c0_19 = arith.constant 0 : index
    %c0_20 = arith.constant 0 : index
    %23 = vector.load %arg7[%c0_18, %c0_19, %c0_20] : memref<4x128x128xf32, #tpu.memory_space<vmem>>, vector<1x128x128xf32>
    %24 = vector.shape_cast %23 : vector<1x128x128xf32> to vector<128x128xf32>
    %cst_21 = arith.constant dense<0.000000e+00> : vector<16x128xf32>
    %25 = tpu.matmul %22, %24, %cst_21 {dimension_numbers = #tpu.dot_dimension_numbers<[1], [0], [0], [1], [0, 0, 1, 1], [], []>} : vector<16x128xf32>, vector<128x128xf32>, vector<16x128xf32> -> vector<16x128xf32>
    %c0_22 = arith.constant 0 : index
    %c0_23 = arith.constant 0 : index
    %c0_24 = arith.constant 0 : index
    %26 = vector.load %arg8[%c0_22, %c0_23, %c0_24] : memref<4x1x128xf32, #tpu.memory_space<vmem>>, vector<1x1x128xf32>
    %27 = vector.shape_cast %26 : vector<1x1x128xf32> to vector<1x128xf32>
    %28 = vector.broadcast %27 : vector<1x128xf32> to vector<16x128xf32>
    %29 = arith.addf %25, %28 : vector<16x128xf32>
    %cst_25 = arith.constant 5.000000e-01 : f32
    %30 = vector.broadcast %cst_25 : f32 to vector<16x128xf32>
    %31 = arith.mulf %30, %29 : vector<16x128xf32>
    %cst_26 = arith.constant 0.707106769 : f32
    %32 = vector.broadcast %cst_26 : f32 to vector<16x128xf32>
    %33 = arith.mulf %29, %32 : vector<16x128xf32>
    %34 = math.erf %33 : vector<16x128xf32>
    %cst_27 = arith.constant 1.000000e+00 : f32
    %35 = vector.broadcast %cst_27 : f32 to vector<16x128xf32>
    %36 = arith.addf %35, %34 : vector<16x128xf32>
    %37 = arith.mulf %31, %36 : vector<16x128xf32>
    %c1 = arith.constant 1 : index
    %c0_28 = arith.constant 0 : index
    %c0_29 = arith.constant 0 : index
    %38 = vector.load %arg5[%c1, %c0_28, %c0_29] : memref<4x128x128xf32, #tpu.memory_space<vmem>>, vector<1x128x128xf32>
    %39 = vector.shape_cast %38 : vector<1x128x128xf32> to vector<128x128xf32>
    %cst_30 = arith.constant dense<0.000000e+00> : vector<16x128xf32>
    %40 = tpu.matmul %37, %39, %cst_30 {dimension_numbers = #tpu.dot_dimension_numbers<[1], [0], [0], [1], [0, 0, 1, 1], [], []>} : vector<16x128xf32>, vector<128x128xf32>, vector<16x128xf32> -> vector<16x128xf32>
    %c1_31 = arith.constant 1 : index
    %c0_32 = arith.constant 0 : index
    %c0_33 = arith.constant 0 : index
    %41 = vector.load %arg6[%c1_31, %c0_32, %c0_33] : memref<4x1x128xf32, #tpu.memory_space<vmem>>, vector<1x1x128xf32>
    %42 = vector.shape_cast %41 : vector<1x1x128xf32> to vector<1x128xf32>
    %43 = vector.broadcast %42 : vector<1x128xf32> to vector<16x128xf32>
    %44 = arith.addf %40, %43 : vector<16x128xf32>
    %cst_34 = arith.constant 5.000000e-01 : f32
    %45 = vector.broadcast %cst_34 : f32 to vector<16x128xf32>
    %46 = arith.mulf %45, %44 : vector<16x128xf32>
    %cst_35 = arith.constant 0.707106769 : f32
    %47 = vector.broadcast %cst_35 : f32 to vector<16x128xf32>
    %48 = arith.mulf %44, %47 : vector<16x128xf32>
    %49 = math.erf %48 : vector<16x128xf32>
    %cst_36 = arith.constant 1.000000e+00 : f32
    %50 = vector.broadcast %cst_36 : f32 to vector<16x128xf32>
    %51 = arith.addf %50, %49 : vector<16x128xf32>
    %52 = arith.mulf %46, %51 : vector<16x128xf32>
    %cst_37 = arith.constant dense<0.000000e+00> : vector<16x128xf32>
    %53 = tpu.matmul %0, %52, %cst_37 {dimension_numbers = #tpu.dot_dimension_numbers<[1], [0], [0], [1], [0, 0, 1, 1], [], []>} : vector<16x16xf32>, vector<16x128xf32>, vector<16x128xf32> -> vector<16x128xf32>
    %c1_38 = arith.constant 1 : index
    %c0_39 = arith.constant 0 : index
    %c0_40 = arith.constant 0 : index
    %54 = vector.load %arg7[%c1_38, %c0_39, %c0_40] : memref<4x128x128xf32, #tpu.memory_space<vmem>>, vector<1x128x128xf32>
    %55 = vector.shape_cast %54 : vector<1x128x128xf32> to vector<128x128xf32>
    %cst_41 = arith.constant dense<0.000000e+00> : vector<16x128xf32>
    %56 = tpu.matmul %53, %55, %cst_41 {dimension_numbers = #tpu.dot_dimension_numbers<[1], [0], [0], [1], [0, 0, 1, 1], [], []>} : vector<16x128xf32>, vector<128x128xf32>, vector<16x128xf32> -> vector<16x128xf32>
    %c1_42 = arith.constant 1 : index
    %c0_43 = arith.constant 0 : index
    %c0_44 = arith.constant 0 : index
    %57 = vector.load %arg8[%c1_42, %c0_43, %c0_44] : memref<4x1x128xf32, #tpu.memory_space<vmem>>, vector<1x1x128xf32>
    %58 = vector.shape_cast %57 : vector<1x1x128xf32> to vector<1x128xf32>
    %59 = vector.broadcast %58 : vector<1x128xf32> to vector<16x128xf32>
    %60 = arith.addf %56, %59 : vector<16x128xf32>
    %cst_45 = arith.constant 5.000000e-01 : f32
    %61 = vector.broadcast %cst_45 : f32 to vector<16x128xf32>
    %62 = arith.mulf %61, %60 : vector<16x128xf32>
    %cst_46 = arith.constant 0.707106769 : f32
    %63 = vector.broadcast %cst_46 : f32 to vector<16x128xf32>
    %64 = arith.mulf %60, %63 : vector<16x128xf32>
    %65 = math.erf %64 : vector<16x128xf32>
    %cst_47 = arith.constant 1.000000e+00 : f32
    %66 = vector.broadcast %cst_47 : f32 to vector<16x128xf32>
    %67 = arith.addf %66, %65 : vector<16x128xf32>
    %68 = arith.mulf %62, %67 : vector<16x128xf32>
    %c2 = arith.constant 2 : index
    %c0_48 = arith.constant 0 : index
    %c0_49 = arith.constant 0 : index
    %69 = vector.load %arg5[%c2, %c0_48, %c0_49] : memref<4x128x128xf32, #tpu.memory_space<vmem>>, vector<1x128x128xf32>
    %70 = vector.shape_cast %69 : vector<1x128x128xf32> to vector<128x128xf32>
    %cst_50 = arith.constant dense<0.000000e+00> : vector<16x128xf32>
    %71 = tpu.matmul %68, %70, %cst_50 {dimension_numbers = #tpu.dot_dimension_numbers<[1], [0], [0], [1], [0, 0, 1, 1], [], []>} : vector<16x128xf32>, vector<128x128xf32>, vector<16x128xf32> -> vector<16x128xf32>
    %c2_51 = arith.constant 2 : index
    %c0_52 = arith.constant 0 : index
    %c0_53 = arith.constant 0 : index
    %72 = vector.load %arg6[%c2_51, %c0_52, %c0_53] : memref<4x1x128xf32, #tpu.memory_space<vmem>>, vector<1x1x128xf32>
    %73 = vector.shape_cast %72 : vector<1x1x128xf32> to vector<1x128xf32>
    %74 = vector.broadcast %73 : vector<1x128xf32> to vector<16x128xf32>
    %75 = arith.addf %71, %74 : vector<16x128xf32>
    %cst_54 = arith.constant 5.000000e-01 : f32
    %76 = vector.broadcast %cst_54 : f32 to vector<16x128xf32>
    %77 = arith.mulf %76, %75 : vector<16x128xf32>
    %cst_55 = arith.constant 0.707106769 : f32
    %78 = vector.broadcast %cst_55 : f32 to vector<16x128xf32>
    %79 = arith.mulf %75, %78 : vector<16x128xf32>
    %80 = math.erf %79 : vector<16x128xf32>
    %cst_56 = arith.constant 1.000000e+00 : f32
    %81 = vector.broadcast %cst_56 : f32 to vector<16x128xf32>
    %82 = arith.addf %81, %80 : vector<16x128xf32>
    %83 = arith.mulf %77, %82 : vector<16x128xf32>
    %cst_57 = arith.constant dense<0.000000e+00> : vector<16x128xf32>
    %84 = tpu.matmul %0, %83, %cst_57 {dimension_numbers = #tpu.dot_dimension_numbers<[1], [0], [0], [1], [0, 0, 1, 1], [], []>} : vector<16x16xf32>, vector<16x128xf32>, vector<16x128xf32> -> vector<16x128xf32>
    %c2_58 = arith.constant 2 : index
    %c0_59 = arith.constant 0 : index
    %c0_60 = arith.constant 0 : index
    %85 = vector.load %arg7[%c2_58, %c0_59, %c0_60] : memref<4x128x128xf32, #tpu.memory_space<vmem>>, vector<1x128x128xf32>
    %86 = vector.shape_cast %85 : vector<1x128x128xf32> to vector<128x128xf32>
    %cst_61 = arith.constant dense<0.000000e+00> : vector<16x128xf32>
    %87 = tpu.matmul %84, %86, %cst_61 {dimension_numbers = #tpu.dot_dimension_numbers<[1], [0], [0], [1], [0, 0, 1, 1], [], []>} : vector<16x128xf32>, vector<128x128xf32>, vector<16x128xf32> -> vector<16x128xf32>
    %c2_62 = arith.constant 2 : index
    %c0_63 = arith.constant 0 : index
    %c0_64 = arith.constant 0 : index
    %88 = vector.load %arg8[%c2_62, %c0_63, %c0_64] : memref<4x1x128xf32, #tpu.memory_space<vmem>>, vector<1x1x128xf32>
    %89 = vector.shape_cast %88 : vector<1x1x128xf32> to vector<1x128xf32>
    %90 = vector.broadcast %89 : vector<1x128xf32> to vector<16x128xf32>
    %91 = arith.addf %87, %90 : vector<16x128xf32>
    %cst_65 = arith.constant 5.000000e-01 : f32
    %92 = vector.broadcast %cst_65 : f32 to vector<16x128xf32>
    %93 = arith.mulf %92, %91 : vector<16x128xf32>
    %cst_66 = arith.constant 0.707106769 : f32
    %94 = vector.broadcast %cst_66 : f32 to vector<16x128xf32>
    %95 = arith.mulf %91, %94 : vector<16x128xf32>
    %96 = math.erf %95 : vector<16x128xf32>
    %cst_67 = arith.constant 1.000000e+00 : f32
    %97 = vector.broadcast %cst_67 : f32 to vector<16x128xf32>
    %98 = arith.addf %97, %96 : vector<16x128xf32>
    %99 = arith.mulf %93, %98 : vector<16x128xf32>
    %c3 = arith.constant 3 : index
    %c0_68 = arith.constant 0 : index
    %c0_69 = arith.constant 0 : index
    %100 = vector.load %arg5[%c3, %c0_68, %c0_69] : memref<4x128x128xf32, #tpu.memory_space<vmem>>, vector<1x128x128xf32>
    %101 = vector.shape_cast %100 : vector<1x128x128xf32> to vector<128x128xf32>
    %cst_70 = arith.constant dense<0.000000e+00> : vector<16x128xf32>
    %102 = tpu.matmul %99, %101, %cst_70 {dimension_numbers = #tpu.dot_dimension_numbers<[1], [0], [0], [1], [0, 0, 1, 1], [], []>} : vector<16x128xf32>, vector<128x128xf32>, vector<16x128xf32> -> vector<16x128xf32>
    %c3_71 = arith.constant 3 : index
    %c0_72 = arith.constant 0 : index
    %c0_73 = arith.constant 0 : index
    %103 = vector.load %arg6[%c3_71, %c0_72, %c0_73] : memref<4x1x128xf32, #tpu.memory_space<vmem>>, vector<1x1x128xf32>
    %104 = vector.shape_cast %103 : vector<1x1x128xf32> to vector<1x128xf32>
    %105 = vector.broadcast %104 : vector<1x128xf32> to vector<16x128xf32>
    %106 = arith.addf %102, %105 : vector<16x128xf32>
    %cst_74 = arith.constant 5.000000e-01 : f32
    %107 = vector.broadcast %cst_74 : f32 to vector<16x128xf32>
    %108 = arith.mulf %107, %106 : vector<16x128xf32>
    %cst_75 = arith.constant 0.707106769 : f32
    %109 = vector.broadcast %cst_75 : f32 to vector<16x128xf32>
    %110 = arith.mulf %106, %109 : vector<16x128xf32>
    %111 = math.erf %110 : vector<16x128xf32>
    %cst_76 = arith.constant 1.000000e+00 : f32
    %112 = vector.broadcast %cst_76 : f32 to vector<16x128xf32>
    %113 = arith.addf %112, %111 : vector<16x128xf32>
    %114 = arith.mulf %108, %113 : vector<16x128xf32>
    %cst_77 = arith.constant dense<0.000000e+00> : vector<16x128xf32>
    %115 = tpu.matmul %0, %114, %cst_77 {dimension_numbers = #tpu.dot_dimension_numbers<[1], [0], [0], [1], [0, 0, 1, 1], [], []>} : vector<16x16xf32>, vector<16x128xf32>, vector<16x128xf32> -> vector<16x128xf32>
    %c3_78 = arith.constant 3 : index
    %c0_79 = arith.constant 0 : index
    %c0_80 = arith.constant 0 : index
    %116 = vector.load %arg7[%c3_78, %c0_79, %c0_80] : memref<4x128x128xf32, #tpu.memory_space<vmem>>, vector<1x128x128xf32>
    %117 = vector.shape_cast %116 : vector<1x128x128xf32> to vector<128x128xf32>
    %cst_81 = arith.constant dense<0.000000e+00> : vector<16x128xf32>
    %118 = tpu.matmul %115, %117, %cst_81 {dimension_numbers = #tpu.dot_dimension_numbers<[1], [0], [0], [1], [0, 0, 1, 1], [], []>} : vector<16x128xf32>, vector<128x128xf32>, vector<16x128xf32> -> vector<16x128xf32>
    %c3_82 = arith.constant 3 : index
    %c0_83 = arith.constant 0 : index
    %c0_84 = arith.constant 0 : index
    %119 = vector.load %arg8[%c3_82, %c0_83, %c0_84] : memref<4x1x128xf32, #tpu.memory_space<vmem>>, vector<1x1x128xf32>
    %120 = vector.shape_cast %119 : vector<1x1x128xf32> to vector<1x128xf32>
    %121 = vector.broadcast %120 : vector<1x128xf32> to vector<16x128xf32>
    %122 = arith.addf %118, %121 : vector<16x128xf32>
    %cst_85 = arith.constant 5.000000e-01 : f32
    %123 = vector.broadcast %cst_85 : f32 to vector<16x128xf32>
    %124 = arith.mulf %123, %122 : vector<16x128xf32>
    %cst_86 = arith.constant 0.707106769 : f32
    %125 = vector.broadcast %cst_86 : f32 to vector<16x128xf32>
    %126 = arith.mulf %122, %125 : vector<16x128xf32>
    %127 = math.erf %126 : vector<16x128xf32>
    %cst_87 = arith.constant 1.000000e+00 : f32
    %128 = vector.broadcast %cst_87 : f32 to vector<16x128xf32>
    %129 = arith.addf %128, %127 : vector<16x128xf32>
    %130 = arith.mulf %124, %129 : vector<16x128xf32>
    %c0_88 = arith.constant 0 : index
    %c0_89 = arith.constant 0 : index
    %131 = vector.load %arg2[%c0_88, %c0_89] : memref<8x16xf32, #tpu.memory_space<vmem>>, vector<8x16xf32>
    %cst_90 = arith.constant dense<0.000000e+00> : vector<8x128xf32>
    %132 = tpu.matmul %131, %130, %cst_90 {dimension_numbers = #tpu.dot_dimension_numbers<[1], [0], [0], [1], [0, 0, 1, 1], [], []>} : vector<8x16xf32>, vector<16x128xf32>, vector<8x128xf32> -> vector<8x128xf32>
    %c0_91 = arith.constant 0 : index
    %c0_92 = arith.constant 0 : index
    %133 = vector.load %arg9[%c0_91, %c0_92] : memref<128x128xf32, #tpu.memory_space<vmem>>, vector<128x128xf32>
    %cst_93 = arith.constant dense<0.000000e+00> : vector<8x128xf32>
    %134 = tpu.matmul %132, %133, %cst_93 {dimension_numbers = #tpu.dot_dimension_numbers<[1], [0], [0], [1], [0, 0, 1, 1], [], []>} : vector<8x128xf32>, vector<128x128xf32>, vector<8x128xf32> -> vector<8x128xf32>
    %c0_94 = arith.constant 0 : index
    %c0_95 = arith.constant 0 : index
    %135 = vector.load %arg10[%c0_94, %c0_95] : memref<1x128xf32, #tpu.memory_space<vmem>>, vector<1x128xf32>
    %136 = vector.broadcast %135 : vector<1x128xf32> to vector<8x128xf32>
    %137 = arith.addf %134, %136 : vector<8x128xf32>
    %c0_96 = arith.constant 0 : index
    %c0_97 = arith.constant 0 : index
    %138 = vector.load %arg11[%c0_96, %c0_97] : memref<8x128xf32, #tpu.memory_space<vmem>>, vector<8x128xf32>
    tpu.vector_store %arg11[%c0_96, %c0_97], %137 {strides = array<i32>} : memref<8x128xf32, #tpu.memory_space<vmem>>, vector<8x128xf32>,
    return
  }
}

</mosaic_0001>

<llo_original>
// kernel: conductivity_predictor_forward.1
$region0: #{conductivity_predictor_forward.1}
  #allocation0 [shape = 'u32[]', space=smem, size = 0x4, offset = 0x4, fixed_abs, tag = 'smem constant byte address 0x4 - core index']
  #allocation1 [shape = 'u32[72,128]{1,0:T(1,128)}', space=vmem, size = 0x9000, scoped, tag = 'internal scratch']
  %s0 = inlined_call_operand.vmem [shape: f32[16,128], index: 0, kind: input, shape index: {}]
  %s1 = inlined_call_operand.vmem [shape: f32[16,16], index: 1, kind: input, shape index: {}]
  %s2 = inlined_call_operand.vmem [shape: f32[8,16], index: 2, kind: input, shape index: {}]
  %s3 = inlined_call_operand.vmem [shape: f32[128,128], index: 3, kind: input, shape index: {}]
  %s4 = inlined_call_operand.vmem [shape: f32[1,128], index: 4, kind: input, shape index: {}]
  %s5 = inlined_call_operand.vmem [shape: f32[4,128,128], index: 5, kind: input, shape index: {}]
  %s6 = inlined_call_operand.vmem [shape: f32[4,1,128], index: 6, kind: input, shape index: {}]
  %s7 = inlined_call_operand.vmem [shape: f32[4,128,128], index: 7, kind: input, shape index: {}]
  %s8 = inlined_call_operand.vmem [shape: f32[4,1,128], index: 8, kind: input, shape index: {}]
  %s9 = inlined_call_operand.vmem [shape: f32[128,128], index: 9, kind: input, shape index: {}]
  %s10 = inlined_call_operand.vmem [shape: f32[1,128], index: 10, kind: input, shape index: {}]
  %s11 = inlined_call_operand.vmem [shape: f32[8,128], index: 11, kind: output, shape index: {}]
  %s12 = sld [smem:[#allocation0]]
  $region54: #{conductivity_predictor_forward.1} parent=0
    _
  %s14 = ssub.s32 1, %s12
  %s15 = scalar_select 0, %s14, %s12
  // Predicated region
  $region2: #{conductivity_predictor_forward.1} parent=0 // pred_check
    _
  $region3: #{conductivity_predictor_forward.1} parent=0 // pred_check_branch
    %17 = sbr.rel (0) target = $region5
  $region4: #{conductivity_predictor_forward.1} parent=0 // pred_region
    _
  $region5: #{conductivity_predictor_forward.1} parent=0 // pred_fallthru
    _
  // Predicated region
  $region6: #{conductivity_predictor_forward.1} parent=0 // pred_check
    _
  $region7: #{conductivity_predictor_forward.1} parent=0 // pred_check_branch
    %19 = sbr.rel (0) target = $region9
  $region8: #{conductivity_predictor_forward.1} parent=0 // pred_region
    _
  $region9: #{conductivity_predictor_forward.1} parent=0 // pred_fallthru
    _
  // Predicated region
  $region10: #{conductivity_predictor_forward.1} parent=0 // pred_check
    _
  $region11: #{conductivity_predictor_forward.1} parent=0 // pred_check_branch
    %21 = sbr.rel (0) target = $region13
  $region12: #{conductivity_predictor_forward.1} parent=0 // pred_region
    _
  $region13: #{conductivity_predictor_forward.1} parent=0 // pred_fallthru
    _
  // Predicated region
  $region14: #{conductivity_predictor_forward.1} parent=0 // pred_check
    _
  $region15: #{conductivity_predictor_forward.1} parent=0 // pred_check_branch
    %23 = sbr.rel (0) target = $region17
  $region16: #{conductivity_predictor_forward.1} parent=0 // pred_region
    _
  $region17: #{conductivity_predictor_forward.1} parent=0 // pred_fallthru
    _
  // Predicated region
  $region18: #{conductivity_predictor_forward.1} parent=0 // pred_check
    _
  $region19: #{conductivity_predictor_forward.1} parent=0 // pred_check_branch
    %25 = sbr.rel (0) target = $region21
  $region20: #{conductivity_predictor_forward.1} parent=0 // pred_region
    _
  $region21: #{conductivity_predictor_forward.1} parent=0 // pred_fallthru
    _
  // Predicated region
  $region22: #{conductivity_predictor_forward.1} parent=0 // pred_check
    _
  $region23: #{conductivity_predictor_forward.1} parent=0 // pred_check_branch
    %27 = sbr.rel (0) target = $region25
  $region24: #{conductivity_predictor_forward.1} parent=0 // pred_region
    _
  $region25: #{conductivity_predictor_forward.1} parent=0 // pred_fallthru
    _
  // Predicated region
  $region26: #{conductivity_predictor_forward.1} parent=0 // pred_check
    _
  $region27: #{conductivity_predictor_forward.1} parent=0 // pred_check_branch
    %29 = sbr.rel (0) target = $region29
  $region28: #{conductivity_predictor_forward.1} parent=0 // pred_region
    _
  $region29: #{conductivity_predictor_forward.1} parent=0 // pred_fallthru
    _
  // Predicated region
  $region30: #{conductivity_predictor_forward.1} parent=0 // pred_check
    _
  $region31: #{conductivity_predictor_forward.1} parent=0 // pred_check_branch
    %31 = sbr.rel (0) target = $region33
  $region32: #{conductivity_predictor_forward.1} parent=0 // pred_region
    _
  $region33: #{conductivity_predictor_forward.1} parent=0 // pred_fallthru
    _
  // Predicated region
  $region34: #{conductivity_predictor_forward.1} parent=0 // pred_check
    _
  $region35: #{conductivity_predictor_forward.1} parent=0 // pred_check_branch
    %33 = sbr.rel (0) target = $region37
  $region36: #{conductivity_predictor_forward.1} parent=0 // pred_region
    _
  $region37: #{conductivity_predictor_forward.1} parent=0 // pred_fallthru
    _
  // Predicated region
  $region38: #{conductivity_predictor_forward.1} parent=0 // pred_check
    _
  $region39: #{conductivity_predictor_forward.1} parent=0 // pred_check_branch
    %35 = sbr.rel (0) target = $region41
  $region40: #{conductivity_predictor_forward.1} parent=0 // pred_region
    _
  $region41: #{conductivity_predictor_forward.1} parent=0 // pred_fallthru
    _
  // Predicated region
  $region42: #{conductivity_predictor_forward.1} parent=0 // pred_check
    _
  $region43: #{conductivity_predictor_forward.1} parent=0 // pred_check_branch
    %37 = sbr.rel (0) target = $region45
  $region44: #{conductivity_predictor_forward.1} parent=0 // pred_region
    _
  $region45: #{conductivity_predictor_forward.1} parent=0 // pred_fallthru
    _
  %v38 = vld [vmem:[%s1] sm:$0xff]
  %v39 = vld [vmem:[%s1 + $0x8] sm:$0xff]
  %v40 = vld [vmem:[%s0] sm:$0xff]
  %v41 = vld [vmem:[%s0 + $0x8] sm:$0xff]
  %v42 = vld [vmem:[%s3] sm:$0xff]
  %v43 = vld [vmem:[%s3 + $0x8] sm:$0xff]
  %v44 = vld [vmem:[%s3 + $0x10] sm:$0xff]
  %v45 = vld [vmem:[%s3 + $0x18] sm:$0xff]
  %v46 = vld [vmem:[%s3 + $0x20] sm:$0xff]
  %v47 = vld [vmem:[%s3 + $0x28] sm:$0xff]
  %v48 = vld [vmem:[%s3 + $0x30] sm:$0xff]
  %v49 = vld [vmem:[%s3 + $0x38] sm:$0xff]
  %v50 = vld [vmem:[%s3 + $0x40] sm:$0xff]
  %v51 = vld [vmem:[%s3 + $0x48] sm:$0xff]
  %v52 = vld [vmem:[%s3 + $0x50] sm:$0xff]
  %v53 = vld [vmem:[%s3 + $0x58] sm:$0xff]
  %v54 = vld [vmem:[%s3 + $0x60] sm:$0xff]
  %v55 = vld [vmem:[%s3 + $0x68] sm:$0xff]
  %v56 = vld [vmem:[%s3 + $0x70] sm:$0xff]
  %v57 = vld [vmem:[%s3 + $0x78] sm:$0xff]
  %v58 = vld [vmem:[%s4] sm:$0x1]
  %v60 = vperm.slane %v58, 0
  %62 = vmatpush.msra.mxu0 %v57
  %63 = vmatpush.msra.mxu0 %v56
  %64 = vmatpush.msra.mxu0 %v55
  %65 = vmatpush.msra.mxu0 %v54
  %66 = vmatpush.msra.mxu0 %v53
  %67 = vmatpush.msra.mxu0 %v52
  %68 = vmatpush.msra.mxu0 %v51
  %69 = vmatpush.msra.mxu0 %v50
  %70 = vmatpush.msra.mxu0 %v49
  %71 = vmatpush.msra.mxu0 %v48
  %72 = vmatpush.msra.mxu0 %v47
  %73 = vmatpush.msra.mxu0 %v46
  %74 = vmatpush.msra.mxu0 %v45
  %75 = vmatpush.msra.mxu0 %v44
  %76 = vmatpush.msra.mxu0 %v43
  %77 = vmatpush.msra.mxu0 %v42
  %78 = vmatmul.f32.gmra.mxu0 %v40
  %v79 = vpop.f32.mrf.mxu0
  %v80 = vadd.f32 %v60, %v79
  %81 = vmatmul.f32.gmra.mxu0 %v41
  %v82 = vpop.f32.mrf.mxu0
  %v83 = vadd.f32 %v60, %v82
  %84 = vdwg.mxu0
  %v85 = vld [vmem:[%s5] sm:$0xff]
  %v86 = vld [vmem:[%s5 + $0x8] sm:$0xff]
  %v87 = vld [vmem:[%s5 + $0x10] sm:$0xff]
  %v88 = vld [vmem:[%s5 + $0x18] sm:$0xff]
  %v89 = vld [vmem:[%s5 + $0x20] sm:$0xff]
  %v90 = vld [vmem:[%s5 + $0x28] sm:$0xff]
  %v91 = vld [vmem:[%s5 + $0x30] sm:$0xff]
  %v92 = vld [vmem:[%s5 + $0x38] sm:$0xff]
  %v93 = vld [vmem:[%s5 + $0x40] sm:$0xff]
  %v94 = vld [vmem:[%s5 + $0x48] sm:$0xff]
  %v95 = vld [vmem:[%s5 + $0x50] sm:$0xff]
  %v96 = vld [vmem:[%s5 + $0x58] sm:$0xff]
  %v97 = vld [vmem:[%s5 + $0x60] sm:$0xff]
  %v98 = vld [vmem:[%s5 + $0x68] sm:$0xff]
  %v99 = vld [vmem:[%s5 + $0x70] sm:$0xff]
  %v100 = vld [vmem:[%s5 + $0x78] sm:$0xff]
  %v101 = vld [vmem:[%s6] sm:$0x1]
  %v103 = vperm.slane %v101, 0
  %105 = vmatpush.msra.mxu0 %v100
  %106 = vmatpush.msra.mxu0 %v99
  %107 = vmatpush.msra.mxu0 %v98
  %108 = vmatpush.msra.mxu0 %v97
  %109 = vmatpush.msra.mxu0 %v96
  %110 = vmatpush.msra.mxu0 %v95
  %111 = vmatpush.msra.mxu0 %v94
  %112 = vmatpush.msra.mxu0 %v93
  %113 = vmatpush.msra.mxu0 %v92
  %114 = vmatpush.msra.mxu0 %v91
  %115 = vmatpush.msra.mxu0 %v90
  %116 = vmatpush.msra.mxu0 %v89
  %117 = vmatpush.msra.mxu0 %v88
  %118 = vmatpush.msra.mxu0 %v87
  %119 = vmatpush.msra.mxu0 %v86
  %120 = vmatpush.msra.mxu0 %v85
  %121 = vmatmul.f32.gmra.mxu0 %v80
  %v122 = vpop.f32.mrf.mxu0
  %v123 = vadd.f32 %v103, %v122
  %124 = vmatmul.f32.gmra.mxu0 %v83
  %v125 = vpop.f32.mrf.mxu0
  %v126 = vadd.f32 %v103, %v125
  %127 = vdwg.mxu0
  %v128 = vmul.f32 %v123, 0.5
  %v129 = vmul.f32 %v126, 0.5
  %v130 = vmul.f32 %v123, 0.70710677
  %v131 = vmul.f32 %v126, 0.70710677
  %v132 = vmul.f32 %v130, %v130
  %v133 = vmin.f32 16.0, %v132
  %v134 = vmul.f32 %v133, 2.1237322e-06
  %v135 = vadd.f32 %v134, 0.00028619796
  %v136 = vmul.f32 %v133, %v135
  %v137 = vadd.f32 %v136, 0.0036580483
  %v138 = vmul.f32 %v133, %v137
  %v139 = vadd.f32 %v138, 0.05243302
  %v140 = vmul.f32 %v133, %v139
  %v141 = vadd.f32 %v140, 0.18741608
  %v142 = vmul.f32 %v133, %v141
  %v143 = vadd.f32 %v142, 1.1283791
  %v144 = vmul.f32 %v130, %v143
  %v145 = vmul.f32 %v133, 3.8918573e-05
  %v146 = vadd.f32 %v145, 0.001143296
  %v147 = vmul.f32 %v133, %v146
  %v148 = vadd.f32 %v147, 0.014752088
  %v149 = vmul.f32 %v133, %v148
  %v150 = vadd.f32 %v149, 0.112945676
  %v151 = vmul.f32 %v133, %v150
  %v152 = vadd.f32 %v151, 0.4994258
  %v153 = vmul.f32 %v133, %v152
  %v154 = vadd.f32 %v153, 1.0
  %v155 = vrcp.pop %v154
  %v156 = vmul.f32 %v154, %v155
  %v157 = vsub.f32 1.0, %v156
  %v158 = vmul.f32 %v155, %v157
  %v159 = vadd.f32 %v155, %v158
  %vm160 = vweird.f32 %v154
  %vm161 = vweird.f32 %v155
  %vm162 = vmor %vm160, %vm161
  %v163 = vsel %vm162, %v155, %v159
  %v164 = vand.u32 2147483647, %v154
  %vm165 = vcmp.eq.f32.partialorder %v164, 8.507059e+37
  %v166 = vand.u32 %v154, 2147483648
  %v167 = vor.u32 1.1754944e-38, %v166
  %v168 = vsel %vm165, %v167, %v163
  %v169 = vmul.f32 %v144, %v168
  %v170 = vmin.f32 %v169, 1.0
  %v171 = vmax.f32 %v170, -1.0
  %v172 = vmul.f32 %v131, %v131
  %v173 = vmin.f32 16.0, %v172
  %v174 = vmul.f32 %v173, 2.1237322e-06
  %v175 = vadd.f32 %v174, 0.00028619796
  %v176 = vmul.f32 %v173, %v175
  %v177 = vadd.f32 %v176, 0.0036580483
  %v178 = vmul.f32 %v173, %v177
  %v179 = vadd.f32 %v178, 0.05243302
  %v180 = vmul.f32 %v173, %v179
  %v181 = vadd.f32 %v180, 0.18741608
  %v182 = vmul.f32 %v173, %v181
  %v183 = vadd.f32 %v182, 1.1283791
  %v184 = vmul.f32 %v131, %v183
  %v185 = vmul.f32 %v173, 3.8918573e-05
  %v186 = vadd.f32 %v185, 0.001143296
  %v187 = vmul.f32 %v173, %v186
  %v188 = vadd.f32 %v187, 0.014752088
  %v189 = vmul.f32 %v173, %v188
  %v190 = vadd.f32 %v189, 0.112945676
  %v191 = vmul.f32 %v173, %v190
  %v192 = vadd.f32 %v191, 0.4994258
  %v193 = vmul.f32 %v173, %v192
  %v194 = vadd.f32 %v193, 1.0
  %v195 = vrcp.pop %v194
  %v196 = vmul.f32 %v194, %v195
  %v197 = vsub.f32 1.0, %v196
  %v198 = vmul.f32 %v195, %v197
  %v199 = vadd.f32 %v195, %v198
  %vm200 = vweird.f32 %v194
  %vm201 = vweird.f32 %v195
  %vm202 = vmor %vm200, %vm201
  %v203 = vsel %vm202, %v195, %v199
  %v204 = vand.u32 2147483647, %v194
  %vm205 = vcmp.eq.f32.partialorder %v204, 8.507059e+37
  %v206 = vand.u32 %v194, 2147483648
  %v207 = vor.u32 1.1754944e-38, %v206
  %v208 = vsel %vm205, %v207, %v203
  %v209 = vmul.f32 %v184, %v208
  %v210 = vmin.f32 %v209, 1.0
  %v211 = vmax.f32 %v210, -1.0
  %v212 = vadd.f32 %v171, 1.0
  %v213 = vadd.f32 %v211, 1.0
  %v214 = vmul.f32 %v128, %v212
  %v215 = vmul.f32 %v129, %v213
  %vm216 = vcmask 130048
  %v218 = vsel %vm216, %v38, 0
  %v221 = vsel %vm216, %v39, 0
  %223 = vmatpush.msra.mxu0 0.0
  %224 = vmatpush.msra.mxu0 0.0
  %225 = vmatpush.msra.mxu0 0.0
  %226 = vmatpush.msra.mxu0 0.0
  %227 = vmatpush.msra.mxu0 0.0
  %228 = vmatpush.msra.mxu0 0.0
  %229 = vmatpush.msra.mxu0 0.0
  %230 = vmatpush.msra.mxu0 0.0
  %231 = vmatpush.msra.mxu0 0.0
  %232 = vmatpush.msra.mxu0 0.0
  %233 = vmatpush.msra.mxu0 0.0
  %234 = vmatpush.msra.mxu0 0.0
  %235 = vmatpush.msra.mxu0 0.0
  %236 = vmatpush.msra.mxu0 0.0
  %237 = vmatpush.msra.mxu0 %v215
  %238 = vmatpush.msra.mxu0 %v214
  %239 = vmatmul.f32.gmra.mxu0 %v218
  %v240 = vpop.f32.mrf.mxu0
  %v241 = vadd.f32 0.0, %v240
  %242 = vmatmul.f32.gmra.mxu0 %v221
  %v243 = vpop.f32.mrf.mxu0
  %v244 = vadd.f32 0.0, %v243
  %245 = vdwg.mxu0
  %v246 = vld [vmem:[%s7] sm:$0xff]
  %v247 = vld [vmem:[%s7 + $0x8] sm:$0xff]
  %v248 = vld [vmem:[%s7 + $0x10] sm:$0xff]
  %v249 = vld [vmem:[%s7 + $0x18] sm:$0xff]
  %v250 = vld [vmem:[%s7 + $0x20] sm:$0xff]
  %v251 = vld [vmem:[%s7 + $0x28] sm:$0xff]
  %v252 = vld [vmem:[%s7 + $0x30] sm:$0xff]
  %v253 = vld [vmem:[%s7 + $0x38] sm:$0xff]
  %v254 = vld [vmem:[%s7 + $0x40] sm:$0xff]
  %v255 = vld [vmem:[%s7 + $0x48] sm:$0xff]
  %v256 = vld [vmem:[%s7 + $0x50] sm:$0xff]
  %v257 = vld [vmem:[%s7 + $0x58] sm:$0xff]
  %v258 = vld [vmem:[%s7 + $0x60] sm:$0xff]
  %v259 = vld [vmem:[%s7 + $0x68] sm:$0xff]
  %v260 = vld [vmem:[%s7 + $0x70] sm:$0xff]
  %v261 = vld [vmem:[%s7 + $0x78] sm:$0xff]
  %v262 = vld [vmem:[%s8] sm:$0x1]
  %v264 = vperm.slane %v262, 0
  %266 = vmatpush.msra.mxu0 %v261
  %267 = vmatpush.msra.mxu0 %v260
  %268 = vmatpush.msra.mxu0 %v259
  %269 = vmatpush.msra.mxu0 %v258
  %270 = vmatpush.msra.mxu0 %v257
  %271 = vmatpush.msra.mxu0 %v256
  %272 = vmatpush.msra.mxu0 %v255
  %273 = vmatpush.msra.mxu0 %v254
  %274 = vmatpush.msra.mxu0 %v253
  %275 = vmatpush.msra.mxu0 %v252
  %276 = vmatpush.msra.mxu0 %v251
  %277 = vmatpush.msra.mxu0 %v250
  %278 = vmatpush.msra.mxu0 %v249
  %279 = vmatpush.msra.mxu0 %v248
  %280 = vmatpush.msra.mxu0 %v247
  %281 = vmatpush.msra.mxu0 %v246
  %282 = vmatmul.f32.gmra.mxu0 %v241
  %v283 = vpop.f32.mrf.mxu0
  %v284 = vadd.f32 %v264, %v283
  %285 = vmatmul.f32.gmra.mxu0 %v244
  %v286 = vpop.f32.mrf.mxu0
  %v287 = vadd.f32 %v264, %v286
  %288 = vdwg.mxu0
  %v289 = vmul.f32 %v284, 0.5
  %v290 = vmul.f32 %v287, 0.5
  %v291 = vmul.f32 %v284, 0.70710677
  %v292 = vmul.f32 %v287, 0.70710677
  %v293 = vmul.f32 %v291, %v291
  %v294 = vmin.f32 16.0, %v293
  %v295 = vmul.f32 %v294, 2.1237322e-06
  %v296 = vadd.f32 %v295, 0.00028619796
  %v297 = vmul.f32 %v294, %v296
  %v298 = vadd.f32 %v297, 0.0036580483
  %v299 = vmul.f32 %v294, %v298
  %v300 = vadd.f32 %v299, 0.05243302
  %v301 = vmul.f32 %v294, %v300
  %v302 = vadd.f32 %v301, 0.18741608
  %v303 = vmul.f32 %v294, %v302
  %v304 = vadd.f32 %v303, 1.1283791
  %v305 = vmul.f32 %v291, %v304
  %v306 = vmul.f32 %v294, 3.8918573e-05
  %v307 = vadd.f32 %v306, 0.001143296
  %v308 = vmul.f32 %v294, %v307
  %v309 = vadd.f32 %v308, 0.014752088
  %v310 = vmul.f32 %v294, %v309
  %v311 = vadd.f32 %v310, 0.112945676
  %v312 = vmul.f32 %v294, %v311
  %v313 = vadd.f32 %v312, 0.4994258
  %v314 = vmul.f32 %v294, %v313
  %v315 = vadd.f32 %v314, 1.0
  %v316 = vrcp.pop %v315
  %v317 = vmul.f32 %v315, %v316
  %v318 = vsub.f32 1.0, %v317
  %v319 = vmul.f32 %v316, %v318
  %v320 = vadd.f32 %v316, %v319
  %vm321 = vweird.f32 %v315
  %vm322 = vweird.f32 %v316
  %vm323 = vmor %vm321, %vm322
  %v324 = vsel %vm323, %v316, %v320
  %v325 = vand.u32 2147483647, %v315
  %vm326 = vcmp.eq.f32.partialorder %v325, 8.507059e+37
  %v327 = vand.u32 %v315, 2147483648
  %v328 = vor.u32 1.1754944e-38, %v327
  %v329 = vsel %vm326, %v328, %v324
  %v330 = vmul.f32 %v305, %v329
  %v331 = vmin.f32 %v330, 1.0
  %v332 = vmax.f32 %v331, -1.0
  %v333 = vmul.f32 %v292, %v292
  %v334 = vmin.f32 16.0, %v333
  %v335 = vmul.f32 %v334, 2.1237322e-06
  %v336 = vadd.f32 %v335, 0.00028619796
  %v337 = vmul.f32 %v334, %v336
  %v338 = vadd.f32 %v337, 0.0036580483
  %v339 = vmul.f32 %v334, %v338
  %v340 = vadd.f32 %v339, 0.05243302
  %v341 = vmul.f32 %v334, %v340
  %v342 = vadd.f32 %v341, 0.18741608
  %v343 = vmul.f32 %v334, %v342
  %v344 = vadd.f32 %v343, 1.1283791
  %v345 = vmul.f32 %v292, %v344
  %v346 = vmul.f32 %v334, 3.8918573e-05
  %v347 = vadd.f32 %v346, 0.001143296
  %v348 = vmul.f32 %v334, %v347
  %v349 = vadd.f32 %v348, 0.014752088
  %v350 = vmul.f32 %v334, %v349
  %v351 = vadd.f32 %v350, 0.112945676
  %v352 = vmul.f32 %v334, %v351
  %v353 = vadd.f32 %v352, 0.4994258
  %v354 = vmul.f32 %v334, %v353
  %v355 = vadd.f32 %v354, 1.0
  %v356 = vrcp.pop %v355
  %v357 = vmul.f32 %v355, %v356
  %v358 = vsub.f32 1.0, %v357
  %v359 = vmul.f32 %v356, %v358
  %v360 = vadd.f32 %v356, %v359
  %vm361 = vweird.f32 %v355
  %vm362 = vweird.f32 %v356
  %vm363 = vmor %vm361, %vm362
  %v364 = vsel %vm363, %v356, %v360
  %v365 = vand.u32 2147483647, %v355
  %vm366 = vcmp.eq.f32.partialorder %v365, 8.507059e+37
  %v367 = vand.u32 %v355, 2147483648
  %v368 = vor.u32 1.1754944e-38, %v367
  %v369 = vsel %vm366, %v368, %v364
  %v370 = vmul.f32 %v345, %v369
  %v371 = vmin.f32 %v370, 1.0
  %v372 = vmax.f32 %v371, -1.0
  %v373 = vadd.f32 %v332, 1.0
  %v374 = vadd.f32 %v372, 1.0
  %v375 = vmul.f32 %v289, %v373
  %v376 = vmul.f32 %v290, %v374
  %s377 = scalar_lea.vmem %s5, 128
  %v378 = vld [vmem:[%s377] sm:$0xff]
  %v379 = vld [vmem:[%s377 + $0x8] sm:$0xff]
  %v380 = vld [vmem:[%s377 + $0x10] sm:$0xff]
  %v381 = vld [vmem:[%s377 + $0x18] sm:$0xff]
  %v382 = vld [vmem:[%s377 + $0x20] sm:$0xff]
  %v383 = vld [vmem:[%s377 + $0x28] sm:$0xff]
  %v384 = vld [vmem:[%s377 + $0x30] sm:$0xff]
  %v385 = vld [vmem:[%s377 + $0x38] sm:$0xff]
  %v386 = vld [vmem:[%s377 + $0x40] sm:$0xff]
  %v387 = vld [vmem:[%s377 + $0x48] sm:$0xff]
  %v388 = vld [vmem:[%s377 + $0x50] sm:$0xff]
  %v389 = vld [vmem:[%s377 + $0x58] sm:$0xff]
  %v390 = vld [vmem:[%s377 + $0x60] sm:$0xff]
  %v391 = vld [vmem:[%s377 + $0x68] sm:$0xff]
  %v392 = vld [vmem:[%s377 + $0x70] sm:$0xff]
  %v393 = vld [vmem:[%s377 + $0x78] sm:$0xff]
  %s394 = scalar_lea.vmem %s6, 1
  %v395 = vld [vmem:[%s394] sm:$0x1]
  %v397 = vperm.slane %v395, 0
  %399 = vmatpush.msra.mxu0 %v393
  %400 = vmatpush.msra.mxu0 %v392
  %401 = vmatpush.msra.mxu0 %v391
  %402 = vmatpush.msra.mxu0 %v390
  %403 = vmatpush.msra.mxu0 %v389
  %404 = vmatpush.msra.mxu0 %v388
  %405 = vmatpush.msra.mxu0 %v387
  %406 = vmatpush.msra.mxu0 %v386
  %407 = vmatpush.msra.mxu0 %v385
  %408 = vmatpush.msra.mxu0 %v384
  %409 = vmatpush.msra.mxu0 %v383
  %410 = vmatpush.msra.mxu0 %v382
  %411 = vmatpush.msra.mxu0 %v381
  %412 = vmatpush.msra.mxu0 %v380
  %413 = vmatpush.msra.mxu0 %v379
  %414 = vmatpush.msra.mxu0 %v378
  %415 = vmatmul.f32.gmra.mxu0 %v375
  %v416 = vpop.f32.mrf.mxu0
  %v417 = vadd.f32 %v397, %v416
  %418 = vmatmul.f32.gmra.mxu0 %v376
  %v419 = vpop.f32.mrf.mxu0
  %v420 = vadd.f32 %v397, %v419
  %421 = vdwg.mxu0
  %v422 = vmul.f32 %v417, 0.5
  %v423 = vmul.f32 %v420, 0.5
  %v424 = vmul.f32 %v417, 0.70710677
  %v425 = vmul.f32 %v420, 0.70710677
  %v426 = vmul.f32 %v424, %v424
  %v427 = vmin.f32 16.0, %v426
  %v428 = vmul.f32 %v427, 2.1237322e-06
  %v429 = vadd.f32 %v428, 0.00028619796
  %v430 = vmul.f32 %v427, %v429
  %v431 = vadd.f32 %v430, 0.0036580483
  %v432 = vmul.f32 %v427, %v431
  %v433 = vadd.f32 %v432, 0.05243302
  %v434 = vmul.f32 %v427, %v433
  %v435 = vadd.f32 %v434, 0.18741608
  %v436 = vmul.f32 %v427, %v435
  %v437 = vadd.f32 %v436, 1.1283791
  %v438 = vmul.f32 %v424, %v437
  %v439 = vmul.f32 %v427, 3.8918573e-05
  %v440 = vadd.f32 %v439, 0.001143296
  %v441 = vmul.f32 %v427, %v440
  %v442 = vadd.f32 %v441, 0.014752088
  %v443 = vmul.f32 %v427, %v442
  %v444 = vadd.f32 %v443, 0.112945676
  %v445 = vmul.f32 %v427, %v444
  %v446 = vadd.f32 %v445, 0.4994258
  %v447 = vmul.f32 %v427, %v446
  %v448 = vadd.f32 %v447, 1.0
  %v449 = vrcp.pop %v448
  %v450 = vmul.f32 %v448, %v449
  %v451 = vsub.f32 1.0, %v450
  %v452 = vmul.f32 %v449, %v451
  %v453 = vadd.f32 %v449, %v452
  %vm454 = vweird.f32 %v448
  %vm455 = vweird.f32 %v449
  %vm456 = vmor %vm454, %vm455
  %v457 = vsel %vm456, %v449, %v453
  %v458 = vand.u32 2147483647, %v448
  %vm459 = vcmp.eq.f32.partialorder %v458, 8.507059e+37
  %v460 = vand.u32 %v448, 2147483648
  %v461 = vor.u32 1.1754944e-38, %v460
  %v462 = vsel %vm459, %v461, %v457
  %v463 = vmul.f32 %v438, %v462
  %v464 = vmin.f32 %v463, 1.0
  %v465 = vmax.f32 %v464, -1.0
  %v466 = vmul.f32 %v425, %v425
  %v467 = vmin.f32 16.0, %v466
  %v468 = vmul.f32 %v467, 2.1237322e-06
  %v469 = vadd.f32 %v468, 0.00028619796
  %v470 = vmul.f32 %v467, %v469
  %v471 = vadd.f32 %v470, 0.0036580483
  %v472 = vmul.f32 %v467, %v471
  %v473 = vadd.f32 %v472, 0.05243302
  %v474 = vmul.f32 %v467, %v473
  %v475 = vadd.f32 %v474, 0.18741608
  %v476 = vmul.f32 %v467, %v475
  %v477 = vadd.f32 %v476, 1.1283791
  %v478 = vmul.f32 %v425, %v477
  %v479 = vmul.f32 %v467, 3.8918573e-05
  %v480 = vadd.f32 %v479, 0.001143296
  %v481 = vmul.f32 %v467, %v480
  %v482 = vadd.f32 %v481, 0.014752088
  %v483 = vmul.f32 %v467, %v482
  %v484 = vadd.f32 %v483, 0.112945676
  %v485 = vmul.f32 %v467, %v484
  %v486 = vadd.f32 %v485, 0.4994258
  %v487 = vmul.f32 %v467, %v486
  %v488 = vadd.f32 %v487, 1.0
  %v489 = vrcp.pop %v488
  %v490 = vmul.f32 %v488, %v489
  %v491 = vsub.f32 1.0, %v490
  %v492 = vmul.f32 %v489, %v491
  %v493 = vadd.f32 %v489, %v492
  %vm494 = vweird.f32 %v488
  %vm495 = vweird.f32 %v489
  %vm496 = vmor %vm494, %vm495
  %v497 = vsel %vm496, %v489, %v493
  %v498 = vand.u32 2147483647, %v488
  %vm499 = vcmp.eq.f32.partialorder %v498, 8.507059e+37
  %v500 = vand.u32 %v488, 2147483648
  %v501 = vor.u32 1.1754944e-38, %v500
  %v502 = vsel %vm499, %v501, %v497
  %v503 = vmul.f32 %v478, %v502
  %v504 = vmin.f32 %v503, 1.0
  %v505 = vmax.f32 %v504, -1.0
  %v506 = vadd.f32 %v465, 1.0
  %v507 = vadd.f32 %v505, 1.0
  %v508 = vmul.f32 %v422, %v506
  %v509 = vmul.f32 %v423, %v507
  %510 = vmatpush.msra.mxu0 0.0
  %511 = vmatpush.msra.mxu0 0.0
  %512 = vmatpush.msra.mxu0 0.0
  %513 = vmatpush.msra.mxu0 0.0
  %514 = vmatpush.msra.mxu0 0.0
  %515 = vmatpush.msra.mxu0 0.0
  %516 = vmatpush.msra.mxu0 0.0
  %517 = vmatpush.msra.mxu0 0.0
  %518 = vmatpush.msra.mxu0 0.0
  %519 = vmatpush.msra.mxu0 0.0
  %520 = vmatpush.msra.mxu0 0.0
  %521 = vmatpush.msra.mxu0 0.0
  %522 = vmatpush.msra.mxu0 0.0
  %523 = vmatpush.msra.mxu0 0.0
  %524 = vmatpush.msra.mxu0 %v509
  %525 = vmatpush.msra.mxu0 %v508
  %526 = vmatmul.f32.gmra.mxu0 %v218
  %v527 = vpop.f32.mrf.mxu0
  %v528 = vadd.f32 0.0, %v527
  %529 = vmatmul.f32.gmra.mxu0 %v221
  %v530 = vpop.f32.mrf.mxu0
  %v531 = vadd.f32 0.0, %v530
  %532 = vdwg.mxu0
  %s533 = scalar_lea.vmem %s7, 128
  %v534 = vld [vmem:[%s533] sm:$0xff]
  %v535 = vld [vmem:[%s533 + $0x8] sm:$0xff]
  %v536 = vld [vmem:[%s533 + $0x10] sm:$0xff]
  %v537 = vld [vmem:[%s533 + $0x18] sm:$0xff]
  %v538 = vld [vmem:[%s533 + $0x20] sm:$0xff]
  %v539 = vld [vmem:[%s533 + $0x28] sm:$0xff]
  %v540 = vld [vmem:[%s533 + $0x30] sm:$0xff]
  %v541 = vld [vmem:[%s533 + $0x38] sm:$0xff]
  %v542 = vld [vmem:[%s533 + $0x40] sm:$0xff]
  %v543 = vld [vmem:[%s533 + $0x48] sm:$0xff]
  %v544 = vld [vmem:[%s533 + $0x50] sm:$0xff]
  %v545 = vld [vmem:[%s533 + $0x58] sm:$0xff]
  %v546 = vld [vmem:[%s533 + $0x60] sm:$0xff]
  %v547 = vld [vmem:[%s533 + $0x68] sm:$0xff]
  %v548 = vld [vmem:[%s533 + $0x70] sm:$0xff]
  %v549 = vld [vmem:[%s533 + $0x78] sm:$0xff]
  %s550 = scalar_lea.vmem %s8, 1
  %v551 = vld [vmem:[%s550] sm:$0x1]
  %v553 = vperm.slane %v551, 0
  %555 = vmatpush.msra.mxu0 %v549
  %556 = vmatpush.msra.mxu0 %v548
  %557 = vmatpush.msra.mxu0 %v547
  %558 = vmatpush.msra.mxu0 %v546
  %559 = vmatpush.msra.mxu0 %v545
  %560 = vmatpush.msra.mxu0 %v544
  %561 = vmatpush.msra.mxu0 %v543
  %562 = vmatpush.msra.mxu0 %v542
  %563 = vmatpush.msra.mxu0 %v541
  %564 = vmatpush.msra.mxu0 %v540
  %565 = vmatpush.msra.mxu0 %v539
  %566 = vmatpush.msra.mxu0 %v538
  %567 = vmatpush.msra.mxu0 %v537
  %568 = vmatpush.msra.mxu0 %v536
  %569 = vmatpush.msra.mxu0 %v535
  %570 = vmatpush.msra.mxu0 %v534
  %571 = vmatmul.f32.gmra.mxu0 %v528
  %v572 = vpop.f32.mrf.mxu0
  %v573 = vadd.f32 %v553, %v572
  %574 = vmatmul.f32.gmra.mxu0 %v531
  %v575 = vpop.f32.mrf.mxu0
  %v576 = vadd.f32 %v553, %v575
  %577 = vdwg.mxu0
  %v578 = vmul.f32 %v573, 0.5
  %v579 = vmul.f32 %v576, 0.5
  %v580 = vmul.f32 %v573, 0.70710677
  %v581 = vmul.f32 %v576, 0.70710677
  %v582 = vmul.f32 %v580, %v580
  %v583 = vmin.f32 16.0, %v582
  %v584 = vmul.f32 %v583, 2.1237322e-06
  %v585 = vadd.f32 %v584, 0.00028619796
  %v586 = vmul.f32 %v583, %v585
  %v587 = vadd.f32 %v586, 0.0036580483
  %v588 = vmul.f32 %v583, %v587
  %v589 = vadd.f32 %v588, 0.05243302
  %v590 = vmul.f32 %v583, %v589
  %v591 = vadd.f32 %v590, 0.18741608
  %v592 = vmul.f32 %v583, %v591
  %v593 = vadd.f32 %v592, 1.1283791
  %v594 = vmul.f32 %v580, %v593
  %v595 = vmul.f32 %v583, 3.8918573e-05
  %v596 = vadd.f32 %v595, 0.001143296
  %v597 = vmul.f32 %v583, %v596
  %v598 = vadd.f32 %v597, 0.014752088
  %v599 = vmul.f32 %v583, %v598
  %v600 = vadd.f32 %v599, 0.112945676
  %v601 = vmul.f32 %v583, %v600
  %v602 = vadd.f32 %v601, 0.4994258
  %v603 = vmul.f32 %v583, %v602
  %v604 = vadd.f32 %v603, 1.0
  %v605 = vrcp.pop %v604
  %v606 = vmul.f32 %v604, %v605
  %v607 = vsub.f32 1.0, %v606
  %v608 = vmul.f32 %v605, %v607
  %v609 = vadd.f32 %v605, %v608
  %vm610 = vweird.f32 %v604
  %vm611 = vweird.f32 %v605
  %vm612 = vmor %vm610, %vm611
  %v613 = vsel %vm612, %v605, %v609
  %v614 = vand.u32 2147483647, %v604
  %vm615 = vcmp.eq.f32.partialorder %v614, 8.507059e+37
  %v616 = vand.u32 %v604, 2147483648
  %v617 = vor.u32 1.1754944e-38, %v616
  %v618 = vsel %vm615, %v617, %v613
  %v619 = vmul.f32 %v594, %v618
  %v620 = vmin.f32 %v619, 1.0
  %v621 = vmax.f32 %v620, -1.0
  %v622 = vmul.f32 %v581, %v581
  %v623 = vmin.f32 16.0, %v622
  %v624 = vmul.f32 %v623, 2.1237322e-06
  %v625 = vadd.f32 %v624, 0.00028619796
  %v626 = vmul.f32 %v623, %v625
  %v627 = vadd.f32 %v626, 0.0036580483
  %v628 = vmul.f32 %v623, %v627
  %v629 = vadd.f32 %v628, 0.05243302
  %v630 = vmul.f32 %v623, %v629
  %v631 = vadd.f32 %v630, 0.18741608
  %v632 = vmul.f32 %v623, %v631
  %v633 = vadd.f32 %v632, 1.1283791
  %v634 = vmul.f32 %v581, %v633
  %v635 = vmul.f32 %v623, 3.8918573e-05
  %v636 = vadd.f32 %v635, 0.001143296
  %v637 = vmul.f32 %v623, %v636
  %v638 = vadd.f32 %v637, 0.014752088
  %v639 = vmul.f32 %v623, %v638
  %v640 = vadd.f32 %v639, 0.112945676
  %v641 = vmul.f32 %v623, %v640
  %v642 = vadd.f32 %v641, 0.4994258
  %v643 = vmul.f32 %v623, %v642
  %v644 = vadd.f32 %v643, 1.0
  %v645 = vrcp.pop %v644
  %v646 = vmul.f32 %v644, %v645
  %v647 = vsub.f32 1.0, %v646
  %v648 = vmul.f32 %v645, %v647
  %v649 = vadd.f32 %v645, %v648
  %vm650 = vweird.f32 %v644
  %vm651 = vweird.f32 %v645
  %vm652 = vmor %vm650, %vm651
  %v653 = vsel %vm652, %v645, %v649
  %v654 = vand.u32 2147483647, %v644
  %vm655 = vcmp.eq.f32.partialorder %v654, 8.507059e+37
  %v656 = vand.u32 %v644, 2147483648
  %v657 = vor.u32 1.1754944e-38, %v656
  %v658 = vsel %vm655, %v657, %v653
  %v659 = vmul.f32 %v634, %v658
  %v660 = vmin.f32 %v659, 1.0
  %v661 = vmax.f32 %v660, -1.0
  %v662 = vadd.f32 %v621, 1.0
  %v663 = vadd.f32 %v661, 1.0
  %v664 = vmul.f32 %v578, %v662
  %v665 = vmul.f32 %v579, %v663
  %s666 = scalar_lea.vmem %s5, 256
  %v667 = vld [vmem:[%s666] sm:$0xff]
  %v668 = vld [vmem:[%s666 + $0x8] sm:$0xff]
  %v669 = vld [vmem:[%s666 + $0x10] sm:$0xff]
  %v670 = vld [vmem:[%s666 + $0x18] sm:$0xff]
  %v671 = vld [vmem:[%s666 + $0x20] sm:$0xff]
  %v672 = vld [vmem:[%s666 + $0x28] sm:$0xff]
  %v673 = vld [vmem:[%s666 + $0x30] sm:$0xff]
  %v674 = vld [vmem:[%s666 + $0x38] sm:$0xff]
  %v675 = vld [vmem:[%s666 + $0x40] sm:$0xff]
  %v676 = vld [vmem:[%s666 + $0x48] sm:$0xff]
  %v677 = vld [vmem:[%s666 + $0x50] sm:$0xff]
  %v678 = vld [vmem:[%s666 + $0x58] sm:$0xff]
  %v679 = vld [vmem:[%s666 + $0x60] sm:$0xff]
  %v680 = vld [vmem:[%s666 + $0x68] sm:$0xff]
  %v681 = vld [vmem:[%s666 + $0x70] sm:$0xff]
  %v682 = vld [vmem:[%s666 + $0x78] sm:$0xff]
  %s683 = scalar_lea.vmem %s6, 2
  %v684 = vld [vmem:[%s683] sm:$0x1]
  %v686 = vperm.slane %v684, 0
  %688 = vmatpush.msra.mxu0 %v682
  %689 = vmatpush.msra.mxu0 %v681
  %690 = vmatpush.msra.mxu0 %v680
  %691 = vmatpush.msra.mxu0 %v679
  %692 = vmatpush.msra.mxu0 %v678
  %693 = vmatpush.msra.mxu0 %v677
  %694 = vmatpush.msra.mxu0 %v676
  %695 = vmatpush.msra.mxu0 %v675
  %696 = vmatpush.msra.mxu0 %v674
  %697 = vmatpush.msra.mxu0 %v673
  %698 = vmatpush.msra.mxu0 %v672
  %699 = vmatpush.msra.mxu0 %v671
  %700 = vmatpush.msra.mxu0 %v670
  %701 = vmatpush.msra.mxu0 %v669
  %702 = vmatpush.msra.mxu0 %v668
  %703 = vmatpush.msra.mxu0 %v667
  %704 = vmatmul.f32.gmra.mxu0 %v664
  %v705 = vpop.f32.mrf.mxu0
  %v706 = vadd.f32 %v686, %v705
  %707 = vmatmul.f32.gmra.mxu0 %v665
  %v708 = vpop.f32.mrf.mxu0
  %v709 = vadd.f32 %v686, %v708
  %710 = vdwg.mxu0
  %v711 = vmul.f32 %v706, 0.5
  %v712 = vmul.f32 %v709, 0.5
  %v713 = vmul.f32 %v706, 0.70710677
  %v714 = vmul.f32 %v709, 0.70710677
  %v715 = vmul.f32 %v713, %v713
  %v716 = vmin.f32 16.0, %v715
  %v717 = vmul.f32 %v716, 2.1237322e-06
  %v718 = vadd.f32 %v717, 0.00028619796
  %v719 = vmul.f32 %v716, %v718
  %v720 = vadd.f32 %v719, 0.0036580483
  %v721 = vmul.f32 %v716, %v720
  %v722 = vadd.f32 %v721, 0.05243302
  %v723 = vmul.f32 %v716, %v722
  %v724 = vadd.f32 %v723, 0.18741608
  %v725 = vmul.f32 %v716, %v724
  %v726 = vadd.f32 %v725, 1.1283791
  %v727 = vmul.f32 %v713, %v726
  %v728 = vmul.f32 %v716, 3.8918573e-05
  %v729 = vadd.f32 %v728, 0.001143296
  %v730 = vmul.f32 %v716, %v729
  %v731 = vadd.f32 %v730, 0.014752088
  %v732 = vmul.f32 %v716, %v731
  %v733 = vadd.f32 %v732, 0.112945676
  %v734 = vmul.f32 %v716, %v733
  %v735 = vadd.f32 %v734, 0.4994258
  %v736 = vmul.f32 %v716, %v735
  %v737 = vadd.f32 %v736, 1.0
  %v738 = vrcp.pop %v737
  %v739 = vmul.f32 %v737, %v738
  %v740 = vsub.f32 1.0, %v739
  %v741 = vmul.f32 %v738, %v740
  %v742 = vadd.f32 %v738, %v741
  %vm743 = vweird.f32 %v737
  %vm744 = vweird.f32 %v738
  %vm745 = vmor %vm743, %vm744
  %v746 = vsel %vm745, %v738, %v742
  %v747 = vand.u32 2147483647, %v737
  %vm748 = vcmp.eq.f32.partialorder %v747, 8.507059e+37
  %v749 = vand.u32 %v737, 2147483648
  %v750 = vor.u32 1.1754944e-38, %v749
  %v751 = vsel %vm748, %v750, %v746
  %v752 = vmul.f32 %v727, %v751
  %v753 = vmin.f32 %v752, 1.0
  %v754 = vmax.f32 %v753, -1.0
  %v755 = vmul.f32 %v714, %v714
  %v756 = vmin.f32 16.0, %v755
  %v757 = vmul.f32 %v756, 2.1237322e-06
  %v758 = vadd.f32 %v757, 0.00028619796
  %v759 = vmul.f32 %v756, %v758
  %v760 = vadd.f32 %v759, 0.0036580483
  %v761 = vmul.f32 %v756, %v760
  %v762 = vadd.f32 %v761, 0.05243302
  %v763 = vmul.f32 %v756, %v762
  %v764 = vadd.f32 %v763, 0.18741608
  %v765 = vmul.f32 %v756, %v764
  %v766 = vadd.f32 %v765, 1.1283791
  %v767 = vmul.f32 %v714, %v766
  %v768 = vmul.f32 %v756, 3.8918573e-05
  %v769 = vadd.f32 %v768, 0.001143296
  %v770 = vmul.f32 %v756, %v769
  %v771 = vadd.f32 %v770, 0.014752088
  %v772 = vmul.f32 %v756, %v771
  %v773 = vadd.f32 %v772, 0.112945676
  %v774 = vmul.f32 %v756, %v773
  %v775 = vadd.f32 %v774, 0.4994258
  %v776 = vmul.f32 %v756, %v775
  %v777 = vadd.f32 %v776, 1.0
  %v778 = vrcp.pop %v777
  %v779 = vmul.f32 %v777, %v778
  %v780 = vsub.f32 1.0, %v779
  %v781 = vmul.f32 %v778, %v780
  %v782 = vadd.f32 %v778, %v781
  %vm783 = vweird.f32 %v777
  %vm784 = vweird.f32 %v778
  %vm785 = vmor %vm783, %vm784
  %v786 = vsel %vm785, %v778, %v782
  %v787 = vand.u32 2147483647, %v777
  %vm788 = vcmp.eq.f32.partialorder %v787, 8.507059e+37
  %v789 = vand.u32 %v777, 2147483648
  %v790 = vor.u32 1.1754944e-38, %v789
  %v791 = vsel %vm788, %v790, %v786
  %v792 = vmul.f32 %v767, %v791
  %v793 = vmin.f32 %v792, 1.0
  %v794 = vmax.f32 %v793, -1.0
  %v795 = vadd.f32 %v754, 1.0
  %v796 = vadd.f32 %v794, 1.0
  %v797 = vmul.f32 %v711, %v795
  %v798 = vmul.f32 %v712, %v796
  %799 = vmatpush.msra.mxu0 0.0
  %800 = vmatpush.msra.mxu0 0.0
  %801 = vmatpush.msra.mxu0 0.0
  %802 = vmatpush.msra.mxu0 0.0
  %803 = vmatpush.msra.mxu0 0.0
  %804 = vmatpush.msra.mxu0 0.0
  %805 = vmatpush.msra.mxu0 0.0
  %806 = vmatpush.msra.mxu0 0.0
  %807 = vmatpush.msra.mxu0 0.0
  %808 = vmatpush.msra.mxu0 0.0
  %809 = vmatpush.msra.mxu0 0.0
  %810 = vmatpush.msra.mxu0 0.0
  %811 = vmatpush.msra.mxu0 0.0
  %812 = vmatpush.msra.mxu0 0.0
  %813 = vmatpush.msra.mxu0 %v798
  %814 = vmatpush.msra.mxu0 %v797
  %815 = vmatmul.f32.gmra.mxu0 %v218
  %v816 = vpop.f32.mrf.mxu0
  %v817 = vadd.f32 0.0, %v816
  %818 = vmatmul.f32.gmra.mxu0 %v221
  %v819 = vpop.f32.mrf.mxu0
  %v820 = vadd.f32 0.0, %v819
  %821 = vdwg.mxu0
  %s822 = scalar_lea.vmem %s7, 256
  %v823 = vld [vmem:[%s822] sm:$0xff]
  %v824 = vld [vmem:[%s822 + $0x8] sm:$0xff]
  %v825 = vld [vmem:[%s822 + $0x10] sm:$0xff]
  %v826 = vld [vmem:[%s822 + $0x18] sm:$0xff]
  %v827 = vld [vmem:[%s822 + $0x20] sm:$0xff]
  %v828 = vld [vmem:[%s822 + $0x28] sm:$0xff]
  %v829 = vld [vmem:[%s822 + $0x30] sm:$0xff]
  %v830 = vld [vmem:[%s822 + $0x38] sm:$0xff]
  %v831 = vld [vmem:[%s822 + $0x40] sm:$0xff]
  %v832 = vld [vmem:[%s822 + $0x48] sm:$0xff]
  %v833 = vld [vmem:[%s822 + $0x50] sm:$0xff]
  %v834 = vld [vmem:[%s822 + $0x58] sm:$0xff]
  %v835 = vld [vmem:[%s822 + $0x60] sm:$0xff]
  %v836 = vld [vmem:[%s822 + $0x68] sm:$0xff]
  %v837 = vld [vmem:[%s822 + $0x70] sm:$0xff]
  %v838 = vld [vmem:[%s822 + $0x78] sm:$0xff]
  %s839 = scalar_lea.vmem %s8, 2
  %v840 = vld [vmem:[%s839] sm:$0x1]
  %v842 = vperm.slane %v840, 0
  %844 = vmatpush.msra.mxu0 %v838
  %845 = vmatpush.msra.mxu0 %v837
  %846 = vmatpush.msra.mxu0 %v836
  %847 = vmatpush.msra.mxu0 %v835
  %848 = vmatpush.msra.mxu0 %v834
  %849 = vmatpush.msra.mxu0 %v833
  %850 = vmatpush.msra.mxu0 %v832
  %851 = vmatpush.msra.mxu0 %v831
  %852 = vmatpush.msra.mxu0 %v830
  %853 = vmatpush.msra.mxu0 %v829
  %854 = vmatpush.msra.mxu0 %v828
  %855 = vmatpush.msra.mxu0 %v827
  %856 = vmatpush.msra.mxu0 %v826
  %857 = vmatpush.msra.mxu0 %v825
  %858 = vmatpush.msra.mxu0 %v824
  %859 = vmatpush.msra.mxu0 %v823
  %860 = vmatmul.f32.gmra.mxu0 %v817
  %v861 = vpop.f32.mrf.mxu0
  %v862 = vadd.f32 %v842, %v861
  %863 = vmatmul.f32.gmra.mxu0 %v820
  %v864 = vpop.f32.mrf.mxu0
  %v865 = vadd.f32 %v842, %v864
  %866 = vdwg.mxu0
  %v867 = vmul.f32 %v862, 0.5
  %v868 = vmul.f32 %v865, 0.5
  %v869 = vmul.f32 %v862, 0.70710677
  %v870 = vmul.f32 %v865, 0.70710677
  %v871 = vmul.f32 %v869, %v869
  %v872 = vmin.f32 16.0, %v871
  %v873 = vmul.f32 %v872, 2.1237322e-06
  %v874 = vadd.f32 %v873, 0.00028619796
  %v875 = vmul.f32 %v872, %v874
  %v876 = vadd.f32 %v875, 0.0036580483
  %v877 = vmul.f32 %v872, %v876
  %v878 = vadd.f32 %v877, 0.05243302
  %v879 = vmul.f32 %v872, %v878
  %v880 = vadd.f32 %v879, 0.18741608
  %v881 = vmul.f32 %v872, %v880
  %v882 = vadd.f32 %v881, 1.1283791
  %v883 = vmul.f32 %v869, %v882
  %v884 = vmul.f32 %v872, 3.8918573e-05
  %v885 = vadd.f32 %v884, 0.001143296
  %v886 = vmul.f32 %v872, %v885
  %v887 = vadd.f32 %v886, 0.014752088
  %v888 = vmul.f32 %v872, %v887
  %v889 = vadd.f32 %v888, 0.112945676
  %v890 = vmul.f32 %v872, %v889
  %v891 = vadd.f32 %v890, 0.4994258
  %v892 = vmul.f32 %v872, %v891
  %v893 = vadd.f32 %v892, 1.0
  %v894 = vrcp.pop %v893
  %v895 = vmul.f32 %v893, %v894
  %v896 = vsub.f32 1.0, %v895
  %v897 = vmul.f32 %v894, %v896
  %v898 = vadd.f32 %v894, %v897
  %vm899 = vweird.f32 %v893
  %vm900 = vweird.f32 %v894
  %vm901 = vmor %vm899, %vm900
  %v902 = vsel %vm901, %v894, %v898
  %v903 = vand.u32 2147483647, %v893
  %vm904 = vcmp.eq.f32.partialorder %v903, 8.507059e+37
  %v905 = vand.u32 %v893, 2147483648
  %v906 = vor.u32 1.1754944e-38, %v905
  %v907 = vsel %vm904, %v906, %v902
  %v908 = vmul.f32 %v883, %v907
  %v909 = vmin.f32 %v908, 1.0
  %v910 = vmax.f32 %v909, -1.0
  %v911 = vmul.f32 %v870, %v870
  %v912 = vmin.f32 16.0, %v911
  %v913 = vmul.f32 %v912, 2.1237322e-06
  %v914 = vadd.f32 %v913, 0.00028619796
  %v915 = vmul.f32 %v912, %v914
  %v916 = vadd.f32 %v915, 0.0036580483
  %v917 = vmul.f32 %v912, %v916
  %v918 = vadd.f32 %v917, 0.05243302
  %v919 = vmul.f32 %v912, %v918
  %v920 = vadd.f32 %v919, 0.18741608
  %v921 = vmul.f32 %v912, %v920
  %v922 = vadd.f32 %v921, 1.1283791
  %v923 = vmul.f32 %v870, %v922
  %v924 = vmul.f32 %v912, 3.8918573e-05
  %v925 = vadd.f32 %v924, 0.001143296
  %v926 = vmul.f32 %v912, %v925
  %v927 = vadd.f32 %v926, 0.014752088
  %v928 = vmul.f32 %v912, %v927
  %v929 = vadd.f32 %v928, 0.112945676
  %v930 = vmul.f32 %v912, %v929
  %v931 = vadd.f32 %v930, 0.4994258
  %v932 = vmul.f32 %v912, %v931
  %v933 = vadd.f32 %v932, 1.0
  %v934 = vrcp.pop %v933
  %v935 = vmul.f32 %v933, %v934
  %v936 = vsub.f32 1.0, %v935
  %v937 = vmul.f32 %v934, %v936
  %v938 = vadd.f32 %v934, %v937
  %vm939 = vweird.f32 %v933
  %vm940 = vweird.f32 %v934
  %vm941 = vmor %vm939, %vm940
  %v942 = vsel %vm941, %v934, %v938
  %v943 = vand.u32 2147483647, %v933
  %vm944 = vcmp.eq.f32.partialorder %v943, 8.507059e+37
  %v945 = vand.u32 %v933, 2147483648
  %v946 = vor.u32 1.1754944e-38, %v945
  %v947 = vsel %vm944, %v946, %v942
  %v948 = vmul.f32 %v923, %v947
  %v949 = vmin.f32 %v948, 1.0
  %v950 = vmax.f32 %v949, -1.0
  %v951 = vadd.f32 %v910, 1.0
  %v952 = vadd.f32 %v950, 1.0
  %v953 = vmul.f32 %v867, %v951
  %v954 = vmul.f32 %v868, %v952
  %s955 = scalar_lea.vmem %s5, 384
  %v956 = vld [vmem:[%s955] sm:$0xff]
  %v957 = vld [vmem:[%s955 + $0x8] sm:$0xff]
  %v958 = vld [vmem:[%s955 + $0x10] sm:$0xff]
  %v959 = vld [vmem:[%s955 + $0x18] sm:$0xff]
  %v960 = vld [vmem:[%s955 + $0x20] sm:$0xff]
  %v961 = vld [vmem:[%s955 + $0x28] sm:$0xff]
  %v962 = vld [vmem:[%s955 + $0x30] sm:$0xff]
  %v963 = vld [vmem:[%s955 + $0x38] sm:$0xff]
  %v964 = vld [vmem:[%s955 + $0x40] sm:$0xff]
  %v965 = vld [vmem:[%s955 + $0x48] sm:$0xff]
  %v966 = vld [vmem:[%s955 + $0x50] sm:$0xff]
  %v967 = vld [vmem:[%s955 + $0x58] sm:$0xff]
  %v968 = vld [vmem:[%s955 + $0x60] sm:$0xff]
  %v969 = vld [vmem:[%s955 + $0x68] sm:$0xff]
  %v970 = vld [vmem:[%s955 + $0x70] sm:$0xff]
  %v971 = vld [vmem:[%s955 + $0x78] sm:$0xff]
  %s972 = scalar_lea.vmem %s6, 3
  %v973 = vld [vmem:[%s972] sm:$0x1]
  %v975 = vperm.slane %v973, 0
  %977 = vmatpush.msra.mxu0 %v971
  %978 = vmatpush.msra.mxu0 %v970
  %979 = vmatpush.msra.mxu0 %v969
  %980 = vmatpush.msra.mxu0 %v968
  %981 = vmatpush.msra.mxu0 %v967
  %982 = vmatpush.msra.mxu0 %v966
  %983 = vmatpush.msra.mxu0 %v965
  %984 = vmatpush.msra.mxu0 %v964
  %985 = vmatpush.msra.mxu0 %v963
  %986 = vmatpush.msra.mxu0 %v962
  %987 = vmatpush.msra.mxu0 %v961
  %988 = vmatpush.msra.mxu0 %v960
  %989 = vmatpush.msra.mxu0 %v959
  %990 = vmatpush.msra.mxu0 %v958
  %991 = vmatpush.msra.mxu0 %v957
  %992 = vmatpush.msra.mxu0 %v956
  %993 = vmatmul.f32.gmra.mxu0 %v953
  %v994 = vpop.f32.mrf.mxu0
  %v995 = vadd.f32 %v975, %v994
  %996 = vmatmul.f32.gmra.mxu0 %v954
  %v997 = vpop.f32.mrf.mxu0
  %v998 = vadd.f32 %v975, %v997
  %999 = vdwg.mxu0
  %v1000 = vmul.f32 %v995, 0.5
  %v1001 = vmul.f32 %v998, 0.5
  %v1002 = vmul.f32 %v995, 0.70710677
  %v1003 = vmul.f32 %v998, 0.70710677
  %v1004 = vmul.f32 %v1002, %v1002
  %v1005 = vmin.f32 16.0, %v1004
  %v1006 = vmul.f32 %v1005, 2.1237322e-06
  %v1007 = vadd.f32 %v1006, 0.00028619796
  %v1008 = vmul.f32 %v1005, %v1007
  %v1009 = vadd.f32 %v1008, 0.0036580483
  %v1010 = vmul.f32 %v1005, %v1009
  %v1011 = vadd.f32 %v1010, 0.05243302
  %v1012 = vmul.f32 %v1005, %v1011
  %v1013 = vadd.f32 %v1012, 0.18741608
  %v1014 = vmul.f32 %v1005, %v1013
  %v1015 = vadd.f32 %v1014, 1.1283791
  %v1016 = vmul.f32 %v1002, %v1015
  %v1017 = vmul.f32 %v1005, 3.8918573e-05
  %v1018 = vadd.f32 %v1017, 0.001143296
  %v1019 = vmul.f32 %v1005, %v1018
  %v1020 = vadd.f32 %v1019, 0.014752088
  %v1021 = vmul.f32 %v1005, %v1020
  %v1022 = vadd.f32 %v1021, 0.112945676
  %v1023 = vmul.f32 %v1005, %v1022
  %v1024 = vadd.f32 %v1023, 0.4994258
  %v1025 = vmul.f32 %v1005, %v1024
  %v1026 = vadd.f32 %v1025, 1.0
  %v1027 = vrcp.pop %v1026
  %v1028 = vmul.f32 %v1026, %v1027
  %v1029 = vsub.f32 1.0, %v1028
  %v1030 = vmul.f32 %v1027, %v1029
  %v1031 = vadd.f32 %v1027, %v1030
  %vm1032 = vweird.f32 %v1026
  %vm1033 = vweird.f32 %v1027
  %vm1034 = vmor %vm1032, %vm1033
  %v1035 = vsel %vm1034, %v1027, %v1031
  %v1036 = vand.u32 2147483647, %v1026
  %vm1037 = vcmp.eq.f32.partialorder %v1036, 8.507059e+37
  %v1038 = vand.u32 %v1026, 2147483648
  %v1039 = vor.u32 1.1754944e-38, %v1038
  %v1040 = vsel %vm1037, %v1039, %v1035
  %v1041 = vmul.f32 %v1016, %v1040
  %v1042 = vmin.f32 %v1041, 1.0
  %v1043 = vmax.f32 %v1042, -1.0
  %v1044 = vmul.f32 %v1003, %v1003
  %v1045 = vmin.f32 16.0, %v1044
  %v1046 = vmul.f32 %v1045, 2.1237322e-06
  %v1047 = vadd.f32 %v1046, 0.00028619796
  %v1048 = vmul.f32 %v1045, %v1047
  %v1049 = vadd.f32 %v1048, 0.0036580483
  %v1050 = vmul.f32 %v1045, %v1049
  %v1051 = vadd.f32 %v1050, 0.05243302
  %v1052 = vmul.f32 %v1045, %v1051
  %v1053 = vadd.f32 %v1052, 0.18741608
  %v1054 = vmul.f32 %v1045, %v1053
  %v1055 = vadd.f32 %v1054, 1.1283791
  %v1056 = vmul.f32 %v1003, %v1055
  %v1057 = vmul.f32 %v1045, 3.8918573e-05
  %v1058 = vadd.f32 %v1057, 0.001143296
  %v1059 = vmul.f32 %v1045, %v1058
  %v1060 = vadd.f32 %v1059, 0.014752088
  %v1061 = vmul.f32 %v1045, %v1060
  %v1062 = vadd.f32 %v1061, 0.112945676
  %v1063 = vmul.f32 %v1045, %v1062
  %v1064 = vadd.f32 %v1063, 0.4994258
  %v1065 = vmul.f32 %v1045, %v1064
  %v1066 = vadd.f32 %v1065, 1.0
  %v1067 = vrcp.pop %v1066
  %v1068 = vmul.f32 %v1066, %v1067
  %v1069 = vsub.f32 1.0, %v1068
  %v1070 = vmul.f32 %v1067, %v1069
  %v1071 = vadd.f32 %v1067, %v1070
  %vm1072 = vweird.f32 %v1066
  %vm1073 = vweird.f32 %v1067
  %vm1074 = vmor %vm1072, %vm1073
  %v1075 = vsel %vm1074, %v1067, %v1071
  %v1076 = vand.u32 2147483647, %v1066
  %vm1077 = vcmp.eq.f32.partialorder %v1076, 8.507059e+37
  %v1078 = vand.u32 %v1066, 2147483648
  %v1079 = vor.u32 1.1754944e-38, %v1078
  %v1080 = vsel %vm1077, %v1079, %v1075
  %v1081 = vmul.f32 %v1056, %v1080
  %v1082 = vmin.f32 %v1081, 1.0
  %v1083 = vmax.f32 %v1082, -1.0
  %v1084 = vadd.f32 %v1043, 1.0
  %v1085 = vadd.f32 %v1083, 1.0
  %v1086 = vmul.f32 %v1000, %v1084
  %v1087 = vmul.f32 %v1001, %v1085
  %1088 = vmatpush.msra.mxu0 0.0
  %1089 = vmatpush.msra.mxu0 0.0
  %1090 = vmatpush.msra.mxu0 0.0
  %1091 = vmatpush.msra.mxu0 0.0
  %1092 = vmatpush.msra.mxu0 0.0
  %1093 = vmatpush.msra.mxu0 0.0
  %1094 = vmatpush.msra.mxu0 0.0
  %1095 = vmatpush.msra.mxu0 0.0
  %1096 = vmatpush.msra.mxu0 0.0
  %1097 = vmatpush.msra.mxu0 0.0
  %1098 = vmatpush.msra.mxu0 0.0
  %1099 = vmatpush.msra.mxu0 0.0
  %1100 = vmatpush.msra.mxu0 0.0
  %1101 = vmatpush.msra.mxu0 0.0
  %1102 = vmatpush.msra.mxu0 %v1087
  %1103 = vmatpush.msra.mxu0 %v1086
  %1104 = vmatmul.f32.gmra.mxu0 %v218
  %v1105 = vpop.f32.mrf.mxu0
  %v1106 = vadd.f32 0.0, %v1105
  %1107 = vmatmul.f32.gmra.mxu0 %v221
  %v1108 = vpop.f32.mrf.mxu0
  %v1109 = vadd.f32 0.0, %v1108
  %1110 = vdwg.mxu0
  %s1111 = scalar_lea.vmem %s7, 384
  %v1112 = vld [vmem:[%s1111] sm:$0xff]
  %v1113 = vld [vmem:[%s1111 + $0x8] sm:$0xff]
  %v1114 = vld [vmem:[%s1111 + $0x10] sm:$0xff]
  %v1115 = vld [vmem:[%s1111 + $0x18] sm:$0xff]
  %v1116 = vld [vmem:[%s1111 + $0x20] sm:$0xff]
  %v1117 = vld [vmem:[%s1111 + $0x28] sm:$0xff]
  %v1118 = vld [vmem:[%s1111 + $0x30] sm:$0xff]
  %v1119 = vld [vmem:[%s1111 + $0x38] sm:$0xff]
  %v1120 = vld [vmem:[%s1111 + $0x40] sm:$0xff]
  %v1121 = vld [vmem:[%s1111 + $0x48] sm:$0xff]
  %v1122 = vld [vmem:[%s1111 + $0x50] sm:$0xff]
  %v1123 = vld [vmem:[%s1111 + $0x58] sm:$0xff]
  %v1124 = vld [vmem:[%s1111 + $0x60] sm:$0xff]
  %v1125 = vld [vmem:[%s1111 + $0x68] sm:$0xff]
  %v1126 = vld [vmem:[%s1111 + $0x70] sm:$0xff]
  %v1127 = vld [vmem:[%s1111 + $0x78] sm:$0xff]
  %s1128 = scalar_lea.vmem %s8, 3
  %v1129 = vld [vmem:[%s1128] sm:$0x1]
  %v1131 = vperm.slane %v1129, 0
  %1133 = vmatpush.msra.mxu0 %v1127
  %1134 = vmatpush.msra.mxu0 %v1126
  %1135 = vmatpush.msra.mxu0 %v1125
  %1136 = vmatpush.msra.mxu0 %v1124
  %1137 = vmatpush.msra.mxu0 %v1123
  %1138 = vmatpush.msra.mxu0 %v1122
  %1139 = vmatpush.msra.mxu0 %v1121
  %1140 = vmatpush.msra.mxu0 %v1120
  %1141 = vmatpush.msra.mxu0 %v1119
  %1142 = vmatpush.msra.mxu0 %v1118
  %1143 = vmatpush.msra.mxu0 %v1117
  %1144 = vmatpush.msra.mxu0 %v1116
  %1145 = vmatpush.msra.mxu0 %v1115
  %1146 = vmatpush.msra.mxu0 %v1114
  %1147 = vmatpush.msra.mxu0 %v1113
  %1148 = vmatpush.msra.mxu0 %v1112
  %1149 = vmatmul.f32.gmra.mxu0 %v1106
  %v1150 = vpop.f32.mrf.mxu0
  %v1151 = vadd.f32 %v1131, %v1150
  %1152 = vmatmul.f32.gmra.mxu0 %v1109
  %v1153 = vpop.f32.mrf.mxu0
  %v1154 = vadd.f32 %v1131, %v1153
  %1155 = vdwg.mxu0
  %v1156 = vmul.f32 %v1151, 0.5
  %v1157 = vmul.f32 %v1154, 0.5
  %v1158 = vmul.f32 %v1151, 0.70710677
  %v1159 = vmul.f32 %v1154, 0.70710677
  %v1160 = vmul.f32 %v1158, %v1158
  %v1161 = vmin.f32 16.0, %v1160
  %v1162 = vmul.f32 %v1161, 2.1237322e-06
  %v1163 = vadd.f32 %v1162, 0.00028619796
  %v1164 = vmul.f32 %v1161, %v1163
  %v1165 = vadd.f32 %v1164, 0.0036580483
  %v1166 = vmul.f32 %v1161, %v1165
  %v1167 = vadd.f32 %v1166, 0.05243302
  %v1168 = vmul.f32 %v1161, %v1167
  %v1169 = vadd.f32 %v1168, 0.18741608
  %v1170 = vmul.f32 %v1161, %v1169
  %v1171 = vadd.f32 %v1170, 1.1283791
  %v1172 = vmul.f32 %v1158, %v1171
  %v1173 = vmul.f32 %v1161, 3.8918573e-05
  %v1174 = vadd.f32 %v1173, 0.001143296
  %v1175 = vmul.f32 %v1161, %v1174
  %v1176 = vadd.f32 %v1175, 0.014752088
  %v1177 = vmul.f32 %v1161, %v1176
  %v1178 = vadd.f32 %v1177, 0.112945676
  %v1179 = vmul.f32 %v1161, %v1178
  %v1180 = vadd.f32 %v1179, 0.4994258
  %v1181 = vmul.f32 %v1161, %v1180
  %v1182 = vadd.f32 %v1181, 1.0
  %v1183 = vrcp.pop %v1182
  %v1184 = vmul.f32 %v1182, %v1183
  %v1185 = vsub.f32 1.0, %v1184
  %v1186 = vmul.f32 %v1183, %v1185
  %v1187 = vadd.f32 %v1183, %v1186
  %vm1188 = vweird.f32 %v1182
  %vm1189 = vweird.f32 %v1183
  %vm1190 = vmor %vm1188, %vm1189
  %v1191 = vsel %vm1190, %v1183, %v1187
  %v1192 = vand.u32 2147483647, %v1182
  %vm1193 = vcmp.eq.f32.partialorder %v1192, 8.507059e+37
  %v1194 = vand.u32 %v1182, 2147483648
  %v1195 = vor.u32 1.1754944e-38, %v1194
  %v1196 = vsel %vm1193, %v1195, %v1191
  %v1197 = vmul.f32 %v1172, %v1196
  %v1198 = vmin.f32 %v1197, 1.0
  %v1199 = vmax.f32 %v1198, -1.0
  %v1200 = vmul.f32 %v1159, %v1159
  %v1201 = vmin.f32 16.0, %v1200
  %v1202 = vmul.f32 %v1201, 2.1237322e-06
  %v1203 = vadd.f32 %v1202, 0.00028619796
  %v1204 = vmul.f32 %v1201, %v1203
  %v1205 = vadd.f32 %v1204, 0.0036580483
  %v1206 = vmul.f32 %v1201, %v1205
  %v1207 = vadd.f32 %v1206, 0.05243302
  %v1208 = vmul.f32 %v1201, %v1207
  %v1209 = vadd.f32 %v1208, 0.18741608
  %v1210 = vmul.f32 %v1201, %v1209
  %v1211 = vadd.f32 %v1210, 1.1283791
  %v1212 = vmul.f32 %v1159, %v1211
  %v1213 = vmul.f32 %v1201, 3.8918573e-05
  %v1214 = vadd.f32 %v1213, 0.001143296
  %v1215 = vmul.f32 %v1201, %v1214
  %v1216 = vadd.f32 %v1215, 0.014752088
  %v1217 = vmul.f32 %v1201, %v1216
  %v1218 = vadd.f32 %v1217, 0.112945676
  %v1219 = vmul.f32 %v1201, %v1218
  %v1220 = vadd.f32 %v1219, 0.4994258
  %v1221 = vmul.f32 %v1201, %v1220
  %v1222 = vadd.f32 %v1221, 1.0
  %v1223 = vrcp.pop %v1222
  %v1224 = vmul.f32 %v1222, %v1223
  %v1225 = vsub.f32 1.0, %v1224
  %v1226 = vmul.f32 %v1223, %v1225
  %v1227 = vadd.f32 %v1223, %v1226
  %vm1228 = vweird.f32 %v1222
  %vm1229 = vweird.f32 %v1223
  %vm1230 = vmor %vm1228, %vm1229
  %v1231 = vsel %vm1230, %v1223, %v1227
  %v1232 = vand.u32 2147483647, %v1222
  %vm1233 = vcmp.eq.f32.partialorder %v1232, 8.507059e+37
  %v1234 = vand.u32 %v1222, 2147483648
  %v1235 = vor.u32 1.1754944e-38, %v1234
  %v1236 = vsel %vm1233, %v1235, %v1231
  %v1237 = vmul.f32 %v1212, %v1236
  %v1238 = vmin.f32 %v1237, 1.0
  %v1239 = vmax.f32 %v1238, -1.0
  %v1240 = vadd.f32 %v1199, 1.0
  %v1241 = vadd.f32 %v1239, 1.0
  %v1242 = vmul.f32 %v1156, %v1240
  %v1243 = vmul.f32 %v1157, %v1241
  %v1244 = vld [vmem:[%s2] sm:$0xff]
  %v1246 = vsel %vm216, %v1244, 0
  %1248 = vmatpush.msra.mxu0 0.0
  %1249 = vmatpush.msra.mxu0 0.0
  %1250 = vmatpush.msra.mxu0 0.0
  %1251 = vmatpush.msra.mxu0 0.0
  %1252 = vmatpush.msra.mxu0 0.0
  %1253 = vmatpush.msra.mxu0 0.0
  %1254 = vmatpush.msra.mxu0 0.0
  %1255 = vmatpush.msra.mxu0 0.0
  %1256 = vmatpush.msra.mxu0 0.0
  %1257 = vmatpush.msra.mxu0 0.0
  %1258 = vmatpush.msra.mxu0 0.0
  %1259 = vmatpush.msra.mxu0 0.0
  %1260 = vmatpush.msra.mxu0 0.0
  %1261 = vmatpush.msra.mxu0 0.0
  %1262 = vmatpush.msra.mxu0 %v1243
  %1263 = vmatpush.msra.mxu0 %v1242
  %1264 = vmatmul.f32.gmra.mxu0 %v1246
  %v1265 = vpop.f32.mrf.mxu0
  %v1266 = vadd.f32 0.0, %v1265
  %1267 = vdwg.mxu0
  %v1268 = vld [vmem:[%s9] sm:$0xff]
  %v1269 = vld [vmem:[%s9 + $0x8] sm:$0xff]
  %v1270 = vld [vmem:[%s9 + $0x10] sm:$0xff]
  %v1271 = vld [vmem:[%s9 + $0x18] sm:$0xff]
  %v1272 = vld [vmem:[%s9 + $0x20] sm:$0xff]
  %v1273 = vld [vmem:[%s9 + $0x28] sm:$0xff]
  %v1274 = vld [vmem:[%s9 + $0x30] sm:$0xff]
  %v1275 = vld [vmem:[%s9 + $0x38] sm:$0xff]
  %v1276 = vld [vmem:[%s9 + $0x40] sm:$0xff]
  %v1277 = vld [vmem:[%s9 + $0x48] sm:$0xff]
  %v1278 = vld [vmem:[%s9 + $0x50] sm:$0xff]
  %v1279 = vld [vmem:[%s9 + $0x58] sm:$0xff]
  %v1280 = vld [vmem:[%s9 + $0x60] sm:$0xff]
  %v1281 = vld [vmem:[%s9 + $0x68] sm:$0xff]
  %v1282 = vld [vmem:[%s9 + $0x70] sm:$0xff]
  %v1283 = vld [vmem:[%s9 + $0x78] sm:$0xff]
  %v1284 = vld [vmem:[%s10] sm:$0x1]
  %v1286 = vperm.slane %v1284, 0
  %1288 = vmatpush.msra.mxu0 %v1283
  %1289 = vmatpush.msra.mxu0 %v1282
  %1290 = vmatpush.msra.mxu0 %v1281
  %1291 = vmatpush.msra.mxu0 %v1280
  %1292 = vmatpush.msra.mxu0 %v1279
  %1293 = vmatpush.msra.mxu0 %v1278
  %1294 = vmatpush.msra.mxu0 %v1277
  %1295 = vmatpush.msra.mxu0 %v1276
  %1296 = vmatpush.msra.mxu0 %v1275
  %1297 = vmatpush.msra.mxu0 %v1274
  %1298 = vmatpush.msra.mxu0 %v1273
  %1299 = vmatpush.msra.mxu0 %v1272
  %1300 = vmatpush.msra.mxu0 %v1271
  %1301 = vmatpush.msra.mxu0 %v1270
  %1302 = vmatpush.msra.mxu0 %v1269
  %1303 = vmatpush.msra.mxu0 %v1268
  %1304 = vmatmul.f32.gmra.mxu0 %v1266
  %v1305 = vpop.f32.mrf.mxu0
  %v1306 = vadd.f32 %v1286, %v1305
  %1307 = vdwg.mxu0
  %1308 = vst [vmem:[%s11] sm:$0xff] %v1306
  // Predicated region
  $region46: #{conductivity_predictor_forward.1} parent=0 // pred_check
    _
  $region47: #{conductivity_predictor_forward.1} parent=0 // pred_check_branch
    %1310 = sbr.rel (0) target = $region49
  $region48: #{conductivity_predictor_forward.1} parent=0 // pred_region
    _
  $region49: #{conductivity_predictor_forward.1} parent=0 // pred_fallthru
    _
  // Predicated region
  $region50: #{conductivity_predictor_forward.1} parent=0 // pred_check
    _
  $region51: #{conductivity_predictor_forward.1} parent=0 // pred_check_branch
    %1312 = sbr.rel (0) target = $region53
  $region52: #{conductivity_predictor_forward.1} parent=0 // pred_region
    _
  $region53: #{conductivity_predictor_forward.1} parent=0 // pred_fallthru
    _

</llo_original>
